<compile_context>
chip_gen: v6e
topology: v6e:2x2x1
jax: 0.10.0
libtpu: 0.0.40
codegen_flags: <defaults>
</compile_context>

<pallas_src>
import functools
import math

import jax
import jax.numpy as jnp
from jax.experimental import pallas as pl
from jax.experimental.pallas import tpu as pltpu

_EPS = 1e-5                       # nn.LayerNorm default eps
_VMEM_LIMIT = 64 * 1024 * 1024    # generous scoped-VMEM cap (safe on v5e/v6e/v7x)


def _round_up(x, m):
    return ((x + m - 1) // m) * m


def _row_tile(m, max_tm=256):
    """Largest row tile (multiple of 8, <= max_tm) dividing the 8-rounded M."""
    m8 = _round_up(m, 8)
    tm = 8
    for d in range(8, min(max_tm, m8) + 1, 8):
        if m8 % d == 0:
            tm = d
    return tm, m8


def _erf(x):
    # Abramowitz & Stegun 7.1.26 (max abs err ~1.5e-7); exp lands on the EUP.
    a1, a2, a3, a4, a5 = (0.254829592, -0.284496736, 1.421413741,
                          -1.453152027, 1.061405429)
    p = 0.3275911
    sgn = jnp.where(x >= 0.0, 1.0, -1.0)
    z = jnp.abs(x)
    t = 1.0 / (1.0 + p * z)
    poly = ((((a5 * t + a4) * t + a3) * t + a2) * t + a1) * t
    return sgn * (1.0 - poly * jnp.exp(-z * z))


def _gelu_exact(x):
    return 0.5 * x * (1.0 + _erf(x * (1.0 / math.sqrt(2.0))))


def _scaled_layernorm(x, scale, g, b):
    """LayerNorm(x * scale) * g + b in f32.  Variance via E[x^2] - mu^2."""
    x = x * scale
    mu = jnp.mean(x, axis=-1, keepdims=True)
    ex2 = jnp.mean(x * x, axis=-1, keepdims=True)
    var = ex2 - mu * mu
    return (x - mu) * jax.lax.rsqrt(var + _EPS) * g + b


def _tile_absmax(x):
    """max|x| of a 2-D tile, shaped (1, 1, 1) for the per-tile-max output."""
    m = jnp.max(jnp.abs(x), axis=-1, keepdims=True)
    m = jnp.max(m, axis=0, keepdims=True)
    return m.reshape(1, 1, 1)


# --------------------------------- kernels --------------------------------- #

def _ln_matmul_kernel(s_ref, x_ref, g_ref, b_ref, w_ref, wb_ref, o_ref):
    y = _scaled_layernorm(x_ref[...], s_ref[0], g_ref[...], b_ref[...])
    acc = jnp.dot(y.astype(jnp.bfloat16), w_ref[...],
                  preferred_element_type=jnp.float32)
    o_ref[...] = acc + wb_ref[...]


def _ln_residual_kernel(s_ref, x_ref, r_ref, g_ref, b_ref, o_ref, tmax_ref):
    y = _scaled_layernorm(x_ref[...], s_ref[0], g_ref[...], b_ref[...])
    out = r_ref[...] + y
    o_ref[...] = out
    tmax_ref[...] = _tile_absmax(out)


def _mlp_kernel(s_ref, x_ref, g_ref, b_ref, w1_ref, b1_ref, w2_ref, b2_ref,
                o_ref, tmax_ref):
    y = _scaled_layernorm(x_ref[...], s_ref[0], g_ref[...], b_ref[...])
    h = jnp.dot(y.astype(jnp.bfloat16), w1_ref[...],
                preferred_element_type=jnp.float32) + b1_ref[...]
    h = _gelu_exact(h)                                   # (TM, 4E) stays on-chip
    out = jnp.dot(h.astype(jnp.bfloat16), w2_ref[...],
                  preferred_element_type=jnp.float32) + b2_ref[...]
    o_ref[...] = out
    tmax_ref[...] = _tile_absmax(out)


def _attn_outproj_kernel(qkv_ref, mask_ref, wo_ref, bo_ref, a_ref, amax_ref,
                         *, num_heads, head_dim, scale):
    e = num_heads * head_dim
    x = qkv_ref[0]                                       # (S, 3E) f32
    mask = mask_ref[0]                                   # (S, S) additive float
    heads = []
    for h in range(num_heads):                           # static unroll over heads
        lo = h * head_dim
        q = x[:, lo:lo + head_dim].astype(jnp.bfloat16)
        k = x[:, e + lo:e + lo + head_dim].astype(jnp.bfloat16)
        v = x[:, 2 * e + lo:2 * e + lo + head_dim].astype(jnp.bfloat16)
        s = jax.lax.dot_general(q, k, (((1,), (1,)), ((), ())),
                                preferred_element_type=jnp.float32)
        s = s * scale + mask
        s = s - jnp.max(s, axis=-1, keepdims=True)
        p = jnp.exp(s)
        p = p * pl.reciprocal(jnp.sum(p, axis=-1, keepdims=True), approx=True)
        heads.append(jnp.dot(p.astype(jnp.bfloat16), v,
                             preferred_element_type=jnp.float32))
    o = jnp.concatenate(heads, axis=-1)                  # (S, E) f32
    a = jnp.dot(o.astype(jnp.bfloat16), wo_ref[...],
                preferred_element_type=jnp.float32) + bo_ref[...]
    a_ref[0] = a
    amax_ref[...] = _tile_absmax(a)


# --------------------------- pallas_call wrappers --------------------------- #

def _smem_spec():
    return pl.BlockSpec(memory_space=pltpu.MemorySpace.SMEM)


def _compiler_params():
    return pltpu.CompilerParams(dimension_semantics=("parallel",),
                                vmem_limit_bytes=_VMEM_LIMIT)


def _ln_matmul(x, scale, g, b, w_t, w_b):
    m, k = x.shape
    n = w_t.shape[1]
    tm, m_pad = _row_tile(m)
    if m_pad != m:                         # only for M not a multiple of 8
        x = jnp.pad(x, ((0, m_pad - m), (0, 0)))
    out = pl.pallas_call(
        _ln_matmul_kernel,
        out_shape=jax.ShapeDtypeStruct((m_pad, n), jnp.float32),
        grid_spec=pltpu.PrefetchScalarGridSpec(
            num_scalar_prefetch=0,
            grid=(m_pad // tm,),
            in_specs=[
                _smem_spec(),                               # 8/max|x| scalar (SMEM)
                pl.BlockSpec((tm, k), lambda i: (i, 0)),    # activations (streamed)
                pl.BlockSpec((1, k), lambda i: (0, 0)),     # ln gamma (resident)
                pl.BlockSpec((1, k), lambda i: (0, 0)),     # ln beta
                pl.BlockSpec((k, n), lambda i: (0, 0)),     # bf16 weight (resident)
                pl.BlockSpec((1, n), lambda i: (0, 0)),     # bias
            ],
            out_specs=pl.BlockSpec((tm, n), lambda i: (i, 0)),
        ),
        compiler_params=_compiler_params(),
    )(scale, x, g.reshape(1, k), b.reshape(1, k), w_t, w_b.reshape(1, n))
    return out[:m]


def _ln_residual(x, res, scale, g, b):
    m, k = x.shape
    tm, m_pad = _row_tile(m)
    padded = m_pad != m
    if padded:
        x = jnp.pad(x, ((0, m_pad - m), (0, 0)))
        res = jnp.pad(res, ((0, m_pad - m), (0, 0)))
    n_tiles = m_pad // tm
    out, tmax = pl.pallas_call(
        _ln_residual_kernel,
        out_shape=(jax.ShapeDtypeStruct((m_pad, k), jnp.float32),
                   jax.ShapeDtypeStruct((n_tiles, 1, 1), jnp.float32)),
        grid_spec=pltpu.PrefetchScalarGridSpec(
            num_scalar_prefetch=0,
            grid=(n_tiles,),
            in_specs=[
                _smem_spec(),
                pl.BlockSpec((tm, k), lambda i: (i, 0)),
                pl.BlockSpec((tm, k), lambda i: (i, 0)),
                pl.BlockSpec((1, k), lambda i: (0, 0)),
                pl.BlockSpec((1, k), lambda i: (0, 0)),
            ],
            out_specs=(pl.BlockSpec((tm, k), lambda i: (i, 0)),
                       pl.BlockSpec((1, 1, 1), lambda i: (i, 0, 0))),
        ),
        compiler_params=_compiler_params(),
    )(scale, x, res, g.reshape(1, k), b.reshape(1, k))
    out = out[:m]
    absmax = jnp.max(jnp.abs(out)) if padded else jnp.max(tmax)
    return out, absmax


def _mlp(x, scale, g, b, w1_t, b1, w2_t, b2):
    m, k = x.shape
    hdim = w1_t.shape[1]
    n = w2_t.shape[1]
    tm, m_pad = _row_tile(m)
    padded = m_pad != m
    if padded:
        x = jnp.pad(x, ((0, m_pad - m), (0, 0)))
    n_tiles = m_pad // tm
    out, tmax = pl.pallas_call(
        _mlp_kernel,
        out_shape=(jax.ShapeDtypeStruct((m_pad, n), jnp.float32),
                   jax.ShapeDtypeStruct((n_tiles, 1, 1), jnp.float32)),
        grid_spec=pltpu.PrefetchScalarGridSpec(
            num_scalar_prefetch=0,
            grid=(n_tiles,),
            in_specs=[
                _smem_spec(),
                pl.BlockSpec((tm, k), lambda i: (i, 0)),
                pl.BlockSpec((1, k), lambda i: (0, 0)),
                pl.BlockSpec((1, k), lambda i: (0, 0)),
                pl.BlockSpec((k, hdim), lambda i: (0, 0)),   # fc1 weight (bf16)
                pl.BlockSpec((1, hdim), lambda i: (0, 0)),
                pl.BlockSpec((hdim, n), lambda i: (0, 0)),   # fc2 weight (bf16)
                pl.BlockSpec((1, n), lambda i: (0, 0)),
            ],
            out_specs=(pl.BlockSpec((tm, n), lambda i: (i, 0)),
                       pl.BlockSpec((1, 1, 1), lambda i: (i, 0, 0))),
        ),
        compiler_params=_compiler_params(),
    )(scale, x, g.reshape(1, k), b.reshape(1, k),
      w1_t, b1.reshape(1, hdim), w2_t, b2.reshape(1, n))
    out = out[:m]
    absmax = jnp.max(jnp.abs(out)) if padded else jnp.max(tmax)
    return out, absmax


def _attention_outproj(qkv3, mask3, wo_t, bo, *, num_heads):
    bsz, s_len, e3 = qkv3.shape
    e = e3 // 3
    dh = e // num_heads
    out, amax = pl.pallas_call(
        functools.partial(_attn_outproj_kernel, num_heads=num_heads,
                          head_dim=dh, scale=1.0 / math.sqrt(dh)),
        out_shape=(jax.ShapeDtypeStruct((bsz, s_len, e), jnp.float32),
                   jax.ShapeDtypeStruct((bsz, 1, 1), jnp.float32)),
        grid_spec=pltpu.PrefetchScalarGridSpec(
            num_scalar_prefetch=0,
            grid=(bsz,),
            in_specs=[
                pl.BlockSpec((1, s_len, e3), lambda i: (i, 0, 0)),
                pl.BlockSpec((1, s_len, s_len), lambda i: (0, 0, 0)),
                pl.BlockSpec((e, e), lambda i: (0, 0)),      # out_proj weight (bf16)
                pl.BlockSpec((1, e), lambda i: (0, 0)),
            ],
            out_specs=(pl.BlockSpec((1, s_len, e), lambda i: (i, 0, 0)),
                       pl.BlockSpec((1, 1, 1), lambda i: (i, 0, 0))),
        ),
        compiler_params=_compiler_params(),
    )(qkv3, mask3, wo_t, bo.reshape(1, e))
    return out, jnp.max(amax)


# ------------------------------ Block forward ------------------------------ #

def prepare_params(p):
    """One-time (outside jit): transpose projection weights, cast them to bf16."""
    f32 = jnp.float32
    return dict(
        ln1_g=p["ln1_g"].astype(f32), ln1_b=p["ln1_b"].astype(f32),
        ln2_g=p["ln2_g"].astype(f32), ln2_b=p["ln2_b"].astype(f32),
        ln3_g=p["ln3_g"].astype(f32), ln3_b=p["ln3_b"].astype(f32),
        ln4_g=p["ln4_g"].astype(f32), ln4_b=p["ln4_b"].astype(f32),
        in_proj_wT=p["in_proj_w"].T.astype(jnp.bfloat16),
        in_proj_b=p["in_proj_b"].astype(f32),
        out_proj_wT=p["out_proj_w"].T.astype(jnp.bfloat16),
        out_proj_b=p["out_proj_b"].astype(f32),
        fc1_wT=p["fc1_w"].T.astype(jnp.bfloat16),
        fc1_b=p["fc1_b"].astype(f32),
        fc2_wT=p["fc2_w"].T.astype(jnp.bfloat16),
        fc2_b=p["fc2_b"].astype(f32),
    )


@functools.partial(jax.jit, static_argnames=("num_heads",))
def block_forward(hidden_states, attn_mask, params, *, num_heads):
    b, s_len, e = hidden_states.shape
    m = b * s_len
    hs = hidden_states.reshape(m, e).astype(jnp.float32)

    def ln_scale(absmax):   # custom LayerNorm pre-scale: x * (8 / max|x|)
        return (8.0 / absmax).reshape(1).astype(jnp.float32)

    # TODO(synk): the raw-input abs-max still costs one XLA reduction pass; all
    # later LN scales come from per-tile maxima emitted by the producer kernels.
    hs_scale = ln_scale(jnp.max(jnp.abs(hs)))

    # 1. ln_1 fused with the QKV projection.
    qkv = _ln_matmul(hs, hs_scale, params["ln1_g"], params["ln1_b"],
                     params["in_proj_wT"], params["in_proj_b"])          # (M, 3E)

    # 2. attention + out_proj in one kernel; heads sliced in-kernel.
    mask3 = attn_mask.reshape(1, s_len, s_len).astype(jnp.float32)
    a, a_max = _attention_outproj(qkv.reshape(b, s_len, 3 * e), mask3,
                                  params["out_proj_wT"], params["out_proj_b"],
                                  num_heads=num_heads)
    a = a.reshape(m, e)

    # 3. ln_3 + first residual add (also emits max|x| for ln_2).
    x, x_max = _ln_residual(a, hs, ln_scale(a_max),
                            params["ln3_g"], params["ln3_b"])

    # 4. ln_2 + fc1 + GELU + fc2 fused; (M, 4E) intermediate never leaves VMEM.
    m0, m_max = _mlp(x, ln_scale(x_max), params["ln2_g"], params["ln2_b"],
                     params["fc1_wT"], params["fc1_b"],
                     params["fc2_wT"], params["fc2_b"])

    # 5. ln_4 + second residual add.
    out, _ = _ln_residual(m0, x, ln_scale(m_max),
                          params["ln4_g"], params["ln4_b"])
    return out.reshape(b, s_len, e)


# ----------------------------- pure-JAX reference --------------------------- #

def _layernorm_ref(x, g, b):
    x = x / (jnp.max(jnp.abs(x)) / 8.0)
    mu = jnp.mean(x, axis=-1, keepdims=True)
    var = jnp.mean((x - mu) ** 2, axis=-1, keepdims=True)
    return (x - mu) / jnp.sqrt(var + _EPS) * g + b


def _block_ref(hidden, mask, p, num_heads):
    b, s_len, e = hidden.shape
    h = num_heads
    dh = e // h
    x = _layernorm_ref(hidden, p["ln1_g"], p["ln1_b"])
    qkv = x @ p["in_proj_w"].T + p["in_proj_b"]
    q, k, v = jnp.split(qkv, 3, axis=-1)
    q = q.reshape(b, s_len, h, dh).transpose(0, 2, 1, 3)
    k = k.reshape(b, s_len, h, dh).transpose(0, 2, 1, 3)
    v = v.reshape(b, s_len, h, dh).transpose(0, 2, 1, 3)
    scores = jnp.einsum("bhqd,bhkd->bhqk", q, k) / math.sqrt(dh) + mask[None, None]
    attn = jax.nn.softmax(scores, axis=-1)
    a = jnp.einsum("bhqk,bhkd->bhqd", attn, v)
    a = a.transpose(0, 2, 1, 3).reshape(b, s_len, e)
    a = a @ p["out_proj_w"].T + p["out_proj_b"]
    a = _layernorm_ref(a, p["ln3_g"], p["ln3_b"])
    x = hidden + a
    y = _layernorm_ref(x, p["ln2_g"], p["ln2_b"])
    m = jax.nn.gelu(y @ p["fc1_w"].T + p["fc1_b"], approximate=False)
    m = m @ p["fc2_w"].T + p["fc2_b"]
    m = _layernorm_ref(m, p["ln4_g"], p["ln4_b"])
    return x + m


if __name__ == "__main__":
    key = jax.random.PRNGKey(0)
    ks = jax.random.split(key, 20)
    B, S, E, NH, MLP_RATIO = 2, 8, 32, 4, 4
    HID = E * MLP_RATIO

    def rnd(k, shape, scale):
        return jax.random.normal(k, shape, dtype=jnp.float32) * scale

    x = rnd(ks[0], (B, S, E), 1.0)
    causal = jnp.tril(jnp.ones((S, S), dtype=bool))
    attn_mask = jnp.where(causal, 0.0, -1e9).astype(jnp.float32)  # additive mask

    params = dict(
        ln1_g=1.0 + rnd(ks[1], (E,), 0.1), ln1_b=rnd(ks[2], (E,), 0.1),
        ln2_g=1.0 + rnd(ks[3], (E,), 0.1), ln2_b=rnd(ks[4], (E,), 0.1),
        ln3_g=1.0 + rnd(ks[5], (E,), 0.1), ln3_b=rnd(ks[6], (E,), 0.1),
        ln4_g=1.0 + rnd(ks[7], (E,), 0.1), ln4_b=rnd(ks[8], (E,), 0.1),
        in_proj_w=rnd(ks[9], (3 * E, E), E ** -0.5),
        in_proj_b=rnd(ks[10], (3 * E,), 0.02),
        out_proj_w=rnd(ks[11], (E, E), E ** -0.5),
        out_proj_b=rnd(ks[12], (E,), 0.02),
        fc1_w=rnd(ks[13], (HID, E), E ** -0.5),
        fc1_b=rnd(ks[14], (HID,), 0.02),
        fc2_w=rnd(ks[15], (E, HID), HID ** -0.5),
        fc2_b=rnd(ks[16], (E,), 0.02),
    )

    prepared = prepare_params(params)
    out = block_forward(x, attn_mask, prepared, num_heads=NH)
    out = jax.block_until_ready(out)

    ref = _block_ref(x, attn_mask, params, NH)
    assert out.shape == ref.shape, (out.shape, ref.shape)
    # bf16 MXU operands (per the perf review) vs. the pure-f32 reference widen
    # the tolerance slightly relative to an all-f32 kernel.
    err = float(jnp.max(jnp.abs(out - ref)))
    assert err < 8e-2, err
    print("KERNEL_OK")
</pallas_src>

<mosaic_0001>
module attributes {stable_mosaic.version = 11 : i64} {
  func.func @_ln_matmul_kernel(%arg0: i32, %arg1: memref<1xf32, #tpu.memory_space<smem>>, %arg2: memref<16x32xf32, #tpu.memory_space<vmem>>, %arg3: memref<1x32xf32, #tpu.memory_space<vmem>>, %arg4: memref<1x32xf32, #tpu.memory_space<vmem>>, %arg5: memref<32x96xbf16, #tpu.memory_space<vmem>>, %arg6: memref<1x96xf32, #tpu.memory_space<vmem>>, %arg7: memref<16x96xf32, #tpu.memory_space<vmem>>) attributes {dimension_semantics = [#tpu.dimension_semantics<parallel>], iteration_bounds = array<i64: 1>, scalar_prefetch = 0 : i64, scratch_operands = 0 : i64, tpu.core_type = #tpu.core_type<tc>, window_params = [{transform_indices = @transform_0, window_bounds = array<i64: 1>}, {transform_indices = @transform_1, window_bounds = array<i64: 16, 32>}, {pipeline_mode = #tpu.pipeline_mode<synchronous>, transform_indices = @transform_2, window_bounds = array<i64: 1, 32>}, {pipeline_mode = #tpu.pipeline_mode<synchronous>, transform_indices = @transform_3, window_bounds = array<i64: 1, 32>}, {pipeline_mode = #tpu.pipeline_mode<synchronous>, transform_indices = @transform_4, window_bounds = array<i64: 32, 96>}, {pipeline_mode = #tpu.pipeline_mode<synchronous>, transform_indices = @transform_5, window_bounds = array<i64: 1, 96>}, {transform_indices = @transform_6, window_bounds = array<i64: 16, 96>}]} {
    %c0 = arith.constant 0 : index
    %c0_0 = arith.constant 0 : index
    %0 = vector.load %arg2[%c0, %c0_0] : memref<16x32xf32, #tpu.memory_space<vmem>>, vector<16x32xf32>
    %c0_1 = arith.constant 0 : index
    %1 = memref.load %arg1[%c0_1] : memref<1xf32, #tpu.memory_space<smem>>
    %c0_2 = arith.constant 0 : index
    %c0_3 = arith.constant 0 : index
    %2 = vector.load %arg3[%c0_2, %c0_3] : memref<1x32xf32, #tpu.memory_space<vmem>>, vector<1x32xf32>
    %c0_4 = arith.constant 0 : index
    %c0_5 = arith.constant 0 : index
    %3 = vector.load %arg4[%c0_4, %c0_5] : memref<1x32xf32, #tpu.memory_space<vmem>>, vector<1x32xf32>
    %4 = vector.broadcast %1 : f32 to vector<16x32xf32>
    %5 = arith.mulf %0, %4 : vector<16x32xf32>
    %cst = arith.constant dense<0.000000e+00> : vector<16xf32>
    %6 = vector.multi_reduction <add>, %5, %cst [1] : vector<16x32xf32> to vector<16xf32>
    %7 = vector.shape_cast %6 : vector<16xf32> to vector<16x1xf32>
    %cst_6 = arith.constant 3.200000e+01 : f32
    %8 = vector.broadcast %cst_6 : f32 to vector<16x1xf32>
    %9 = arith.divf %7, %8 : vector<16x1xf32>
    %10 = arith.mulf %5, %5 : vector<16x32xf32>
    %cst_7 = arith.constant dense<0.000000e+00> : vector<16xf32>
    %11 = vector.multi_reduction <add>, %10, %cst_7 [1] : vector<16x32xf32> to vector<16xf32>
    %12 = vector.shape_cast %11 : vector<16xf32> to vector<16x1xf32>
    %cst_8 = arith.constant 3.200000e+01 : f32
    %13 = vector.broadcast %cst_8 : f32 to vector<16x1xf32>
    %14 = arith.divf %12, %13 : vector<16x1xf32>
    %15 = arith.mulf %9, %9 : vector<16x1xf32>
    %16 = arith.subf %14, %15 : vector<16x1xf32>
    %17 = vector.broadcast %9 : vector<16x1xf32> to vector<16x32xf32>
    %18 = arith.subf %5, %17 : vector<16x32xf32>
    %cst_9 = arith.constant 9.99999974E-6 : f32
    %19 = vector.broadcast %cst_9 : f32 to vector<16x1xf32>
    %20 = arith.addf %16, %19 : vector<16x1xf32>
    %21 = math.rsqrt %20 : vector<16x1xf32>
    %22 = vector.broadcast %21 : vector<16x1xf32> to vector<16x32xf32>
    %23 = arith.mulf %18, %22 : vector<16x32xf32>
    %24 = vector.broadcast %2 : vector<1x32xf32> to vector<16x32xf32>
    %25 = arith.mulf %23, %24 : vector<16x32xf32>
    %26 = vector.broadcast %3 : vector<1x32xf32> to vector<16x32xf32>
    %27 = arith.addf %25, %26 : vector<16x32xf32>
    %28 = arith.truncf %27 : vector<16x32xf32> to vector<16x32xbf16>
    %c0_10 = arith.constant 0 : index
    %c0_11 = arith.constant 0 : index
    %29 = vector.load %arg5[%c0_10, %c0_11] : memref<32x96xbf16, #tpu.memory_space<vmem>>, vector<32x96xbf16>
    %cst_12 = arith.constant dense<0.000000e+00> : vector<16x96xf32>
    %30 = tpu.matmul %28, %29, %cst_12 {dimension_numbers = #tpu.dot_dimension_numbers<[1], [0], [0], [1], [0, 0, 1, 1], [], []>} : vector<16x32xbf16>, vector<32x96xbf16>, vector<16x96xf32> -> vector<16x96xf32>
    %c0_13 = arith.constant 0 : index
    %c0_14 = arith.constant 0 : index
    %31 = vector.load %arg6[%c0_13, %c0_14] : memref<1x96xf32, #tpu.memory_space<vmem>>, vector<1x96xf32>
    %32 = vector.broadcast %31 : vector<1x96xf32> to vector<16x96xf32>
    %33 = arith.addf %30, %32 : vector<16x96xf32>
    %c0_15 = arith.constant 0 : index
    %c0_16 = arith.constant 0 : index
    %34 = vector.load %arg7[%c0_15, %c0_16] : memref<16x96xf32, #tpu.memory_space<vmem>>, vector<16x96xf32>
    tpu.vector_store %arg7[%c0_15, %c0_16], %33 {strides = array<i32>} : memref<16x96xf32, #tpu.memory_space<vmem>>, vector<16x96xf32>,
    return
  }
  func.func @transform_0(%arg0: i32) -> i32 {
    %c0_i32 = arith.constant 0 : i32
    %c0_i32_0 = arith.constant 0 : i32
    return %c0_i32 : i32
  }
  func.func @transform_1(%arg0: i32) -> (i32, i32) {
    %c0_i32 = arith.constant 0 : i32
    %c0_i32_0 = arith.constant 0 : i32
    return %arg0, %c0_i32 : i32, i32
  }
  func.func @transform_2(%arg0: i32) -> (i32, i32) {
    %c0_i32 = arith.constant 0 : i32
    %c0_i32_0 = arith.constant 0 : i32
    %c0_i32_1 = arith.constant 0 : i32
    return %c0_i32, %c0_i32_0 : i32, i32
  }
  func.func @transform_3(%arg0: i32) -> (i32, i32) {
    %c0_i32 = arith.constant 0 : i32
    %c0_i32_0 = arith.constant 0 : i32
    %c0_i32_1 = arith.constant 0 : i32
    return %c0_i32, %c0_i32_0 : i32, i32
  }
  func.func @transform_4(%arg0: i32) -> (i32, i32) {
    %c0_i32 = arith.constant 0 : i32
    %c0_i32_0 = arith.constant 0 : i32
    %c0_i32_1 = arith.constant 0 : i32
    return %c0_i32, %c0_i32_0 : i32, i32
  }
  func.func @transform_5(%arg0: i32) -> (i32, i32) {
    %c0_i32 = arith.constant 0 : i32
    %c0_i32_0 = arith.constant 0 : i32
    %c0_i32_1 = arith.constant 0 : i32
    return %c0_i32, %c0_i32_0 : i32, i32
  }
  func.func @transform_6(%arg0: i32) -> (i32, i32) {
    %c0_i32 = arith.constant 0 : i32
    %c0_i32_0 = arith.constant 0 : i32
    return %arg0, %c0_i32 : i32, i32
  }
}

module attributes {stable_mosaic.version = 11 : i64} {
  func.func @_attn_outproj_kernel(%arg0: i32, %arg1: memref<1x8x96xf32, #tpu.memory_space<vmem>>, %arg2: memref<1x8x8xf32, #tpu.memory_space<vmem>>, %arg3: memref<32x32xbf16, #tpu.memory_space<vmem>>, %arg4: memref<1x32xf32, #tpu.memory_space<vmem>>, %arg5: memref<1x8x32xf32, #tpu.memory_space<vmem>>, %arg6: memref<1x1x1xf32, #tpu.memory_space<vmem>>) attributes {dimension_semantics = [#tpu.dimension_semantics<parallel>], iteration_bounds = array<i64: 2>, scalar_prefetch = 0 : i64, scratch_operands = 0 : i64, tpu.core_type = #tpu.core_type<tc>, window_params = [{transform_indices = @transform_0, window_bounds = array<i64: 1, 8, 96>}, {pipeline_mode = #tpu.pipeline_mode<synchronous>, transform_indices = @transform_1, window_bounds = array<i64: 1, 8, 8>}, {pipeline_mode = #tpu.pipeline_mode<synchronous>, transform_indices = @transform_2, window_bounds = array<i64: 32, 32>}, {pipeline_mode = #tpu.pipeline_mode<synchronous>, transform_indices = @transform_3, window_bounds = array<i64: 1, 32>}, {transform_indices = @transform_4, window_bounds = array<i64: 1, 8, 32>}, {transform_indices = @transform_5, window_bounds = array<i64: 1, 1, 1>}]} {
    %c0 = arith.constant 0 : index
    %c0_0 = arith.constant 0 : index
    %c0_1 = arith.constant 0 : index
    %0 = vector.load %arg1[%c0, %c0_0, %c0_1] : memref<1x8x96xf32, #tpu.memory_space<vmem>>, vector<1x8x96xf32>
    %1 = vector.shape_cast %0 : vector<1x8x96xf32> to vector<8x96xf32>
    %c0_2 = arith.constant 0 : index
    %c0_3 = arith.constant 0 : index
    %c0_4 = arith.constant 0 : index
    %2 = vector.load %arg2[%c0_2, %c0_3, %c0_4] : memref<1x8x8xf32, #tpu.memory_space<vmem>>, vector<1x8x8xf32>
    %3 = vector.shape_cast %2 : vector<1x8x8xf32> to vector<8x8xf32>
    %4 = vector.extract_strided_slice %1 {offsets = [0, 0], sizes = [8, 8], strides = [1, 1]} : vector<8x96xf32> to vector<8x8xf32>
    %5 = arith.truncf %4 : vector<8x8xf32> to vector<8x8xbf16>
    %6 = vector.extract_strided_slice %1 {offsets = [0, 32], sizes = [8, 8], strides = [1, 1]} : vector<8x96xf32> to vector<8x8xf32>
    %7 = arith.truncf %6 : vector<8x8xf32> to vector<8x8xbf16>
    %8 = vector.extract_strided_slice %1 {offsets = [0, 64], sizes = [8, 8], strides = [1, 1]} : vector<8x96xf32> to vector<8x8xf32>
    %9 = arith.truncf %8 : vector<8x8xf32> to vector<8x8xbf16>
    %cst = arith.constant dense<0.000000e+00> : vector<8x8xf32>
    %10 = tpu.matmul %5, %7, %cst {dimension_numbers = #tpu.dot_dimension_numbers<[1], [1], [0], [0], [0, 0, 1, 0], [], []>} : vector<8x8xbf16>, vector<8x8xbf16>, vector<8x8xf32> -> vector<8x8xf32>
    %cst_5 = arith.constant 0.353553385 : f32
    %11 = vector.broadcast %cst_5 : f32 to vector<8x8xf32>
    %12 = arith.mulf %10, %11 : vector<8x8xf32>
    %13 = arith.addf %12, %3 : vector<8x8xf32>
    %cst_6 = arith.constant dense<0xFF800000> : vector<8xf32>
    %14 = vector.multi_reduction <maximumf>, %13, %cst_6 [1] : vector<8x8xf32> to vector<8xf32>
    %15 = vector.shape_cast %14 : vector<8xf32> to vector<8x1xf32>
    %16 = vector.broadcast %15 : vector<8x1xf32> to vector<8x8xf32>
    %17 = arith.subf %13, %16 : vector<8x8xf32>
    %18 = math.exp %17 : vector<8x8xf32>
    %cst_7 = arith.constant dense<0.000000e+00> : vector<8xf32>
    %19 = vector.multi_reduction <add>, %18, %cst_7 [1] : vector<8x8xf32> to vector<8xf32>
    %20 = vector.shape_cast %19 : vector<8xf32> to vector<8x1xf32>
    %21 = tpu.reciprocal %20 {approx = true} : vector<8x1xf32> -> vector<8x1xf32>
    %22 = vector.broadcast %21 : vector<8x1xf32> to vector<8x8xf32>
    %23 = arith.mulf %18, %22 : vector<8x8xf32>
    %24 = arith.truncf %23 : vector<8x8xf32> to vector<8x8xbf16>
    %cst_8 = arith.constant dense<0.000000e+00> : vector<8x8xf32>
    %25 = tpu.matmul %24, %9, %cst_8 {dimension_numbers = #tpu.dot_dimension_numbers<[1], [0], [0], [1], [0, 0, 1, 1], [], []>} : vector<8x8xbf16>, vector<8x8xbf16>, vector<8x8xf32> -> vector<8x8xf32>
    %26 = vector.extract_strided_slice %1 {offsets = [0, 8], sizes = [8, 8], strides = [1, 1]} : vector<8x96xf32> to vector<8x8xf32>
    %27 = arith.truncf %26 : vector<8x8xf32> to vector<8x8xbf16>
    %28 = vector.extract_strided_slice %1 {offsets = [0, 40], sizes = [8, 8], strides = [1, 1]} : vector<8x96xf32> to vector<8x8xf32>
    %29 = arith.truncf %28 : vector<8x8xf32> to vector<8x8xbf16>
    %30 = vector.extract_strided_slice %1 {offsets = [0, 72], sizes = [8, 8], strides = [1, 1]} : vector<8x96xf32> to vector<8x8xf32>
    %31 = arith.truncf %30 : vector<8x8xf32> to vector<8x8xbf16>
    %cst_9 = arith.constant dense<0.000000e+00> : vector<8x8xf32>
    %32 = tpu.matmul %27, %29, %cst_9 {dimension_numbers = #tpu.dot_dimension_numbers<[1], [1], [0], [0], [0, 0, 1, 0], [], []>} : vector<8x8xbf16>, vector<8x8xbf16>, vector<8x8xf32> -> vector<8x8xf32>
    %cst_10 = arith.constant 0.353553385 : f32
    %33 = vector.broadcast %cst_10 : f32 to vector<8x8xf32>
    %34 = arith.mulf %32, %33 : vector<8x8xf32>
    %35 = arith.addf %34, %3 : vector<8x8xf32>
    %cst_11 = arith.constant dense<0xFF800000> : vector<8xf32>
    %36 = vector.multi_reduction <maximumf>, %35, %cst_11 [1] : vector<8x8xf32> to vector<8xf32>
    %37 = vector.shape_cast %36 : vector<8xf32> to vector<8x1xf32>
    %38 = vector.broadcast %37 : vector<8x1xf32> to vector<8x8xf32>
    %39 = arith.subf %35, %38 : vector<8x8xf32>
    %40 = math.exp %39 : vector<8x8xf32>
    %cst_12 = arith.constant dense<0.000000e+00> : vector<8xf32>
    %41 = vector.multi_reduction <add>, %40, %cst_12 [1] : vector<8x8xf32> to vector<8xf32>
    %42 = vector.shape_cast %41 : vector<8xf32> to vector<8x1xf32>
    %43 = tpu.reciprocal %42 {approx = true} : vector<8x1xf32> -> vector<8x1xf32>
    %44 = vector.broadcast %43 : vector<8x1xf32> to vector<8x8xf32>
    %45 = arith.mulf %40, %44 : vector<8x8xf32>
    %46 = arith.truncf %45 : vector<8x8xf32> to vector<8x8xbf16>
    %cst_13 = arith.constant dense<0.000000e+00> : vector<8x8xf32>
    %47 = tpu.matmul %46, %31, %cst_13 {dimension_numbers = #tpu.dot_dimension_numbers<[1], [0], [0], [1], [0, 0, 1, 1], [], []>} : vector<8x8xbf16>, vector<8x8xbf16>, vector<8x8xf32> -> vector<8x8xf32>
    %48 = vector.extract_strided_slice %1 {offsets = [0, 16], sizes = [8, 8], strides = [1, 1]} : vector<8x96xf32> to vector<8x8xf32>
    %49 = arith.truncf %48 : vector<8x8xf32> to vector<8x8xbf16>
    %50 = vector.extract_strided_slice %1 {offsets = [0, 48], sizes = [8, 8], strides = [1, 1]} : vector<8x96xf32> to vector<8x8xf32>
    %51 = arith.truncf %50 : vector<8x8xf32> to vector<8x8xbf16>
    %52 = vector.extract_strided_slice %1 {offsets = [0, 80], sizes = [8, 8], strides = [1, 1]} : vector<8x96xf32> to vector<8x8xf32>
    %53 = arith.truncf %52 : vector<8x8xf32> to vector<8x8xbf16>
    %cst_14 = arith.constant dense<0.000000e+00> : vector<8x8xf32>
    %54 = tpu.matmul %49, %51, %cst_14 {dimension_numbers = #tpu.dot_dimension_numbers<[1], [1], [0], [0], [0, 0, 1, 0], [], []>} : vector<8x8xbf16>, vector<8x8xbf16>, vector<8x8xf32> -> vector<8x8xf32>
    %cst_15 = arith.constant 0.353553385 : f32
    %55 = vector.broadcast %cst_15 : f32 to vector<8x8xf32>
    %56 = arith.mulf %54, %55 : vector<8x8xf32>
    %57 = arith.addf %56, %3 : vector<8x8xf32>
    %cst_16 = arith.constant dense<0xFF800000> : vector<8xf32>
    %58 = vector.multi_reduction <maximumf>, %57, %cst_16 [1] : vector<8x8xf32> to vector<8xf32>
    %59 = vector.shape_cast %58 : vector<8xf32> to vector<8x1xf32>
    %60 = vector.broadcast %59 : vector<8x1xf32> to vector<8x8xf32>
    %61 = arith.subf %57, %60 : vector<8x8xf32>
    %62 = math.exp %61 : vector<8x8xf32>
    %cst_17 = arith.constant dense<0.000000e+00> : vector<8xf32>
    %63 = vector.multi_reduction <add>, %62, %cst_17 [1] : vector<8x8xf32> to vector<8xf32>
    %64 = vector.shape_cast %63 : vector<8xf32> to vector<8x1xf32>
    %65 = tpu.reciprocal %64 {approx = true} : vector<8x1xf32> -> vector<8x1xf32>
    %66 = vector.broadcast %65 : vector<8x1xf32> to vector<8x8xf32>
    %67 = arith.mulf %62, %66 : vector<8x8xf32>
    %68 = arith.truncf %67 : vector<8x8xf32> to vector<8x8xbf16>
    %cst_18 = arith.constant dense<0.000000e+00> : vector<8x8xf32>
    %69 = tpu.matmul %68, %53, %cst_18 {dimension_numbers = #tpu.dot_dimension_numbers<[1], [0], [0], [1], [0, 0, 1, 1], [], []>} : vector<8x8xbf16>, vector<8x8xbf16>, vector<8x8xf32> -> vector<8x8xf32>
    %70 = vector.extract_strided_slice %1 {offsets = [0, 24], sizes = [8, 8], strides = [1, 1]} : vector<8x96xf32> to vector<8x8xf32>
    %71 = arith.truncf %70 : vector<8x8xf32> to vector<8x8xbf16>
    %72 = vector.extract_strided_slice %1 {offsets = [0, 56], sizes = [8, 8], strides = [1, 1]} : vector<8x96xf32> to vector<8x8xf32>
    %73 = arith.truncf %72 : vector<8x8xf32> to vector<8x8xbf16>
    %74 = vector.extract_strided_slice %1 {offsets = [0, 88], sizes = [8, 8], strides = [1, 1]} : vector<8x96xf32> to vector<8x8xf32>
    %75 = arith.truncf %74 : vector<8x8xf32> to vector<8x8xbf16>
    %cst_19 = arith.constant dense<0.000000e+00> : vector<8x8xf32>
    %76 = tpu.matmul %71, %73, %cst_19 {dimension_numbers = #tpu.dot_dimension_numbers<[1], [1], [0], [0], [0, 0, 1, 0], [], []>} : vector<8x8xbf16>, vector<8x8xbf16>, vector<8x8xf32> -> vector<8x8xf32>
    %cst_20 = arith.constant 0.353553385 : f32
    %77 = vector.broadcast %cst_20 : f32 to vector<8x8xf32>
    %78 = arith.mulf %76, %77 : vector<8x8xf32>
    %79 = arith.addf %78, %3 : vector<8x8xf32>
    %cst_21 = arith.constant dense<0xFF800000> : vector<8xf32>
    %80 = vector.multi_reduction <maximumf>, %79, %cst_21 [1] : vector<8x8xf32> to vector<8xf32>
    %81 = vector.shape_cast %80 : vector<8xf32> to vector<8x1xf32>
    %82 = vector.broadcast %81 : vector<8x1xf32> to vector<8x8xf32>
    %83 = arith.subf %79, %82 : vector<8x8xf32>
    %84 = math.exp %83 : vector<8x8xf32>
    %cst_22 = arith.constant dense<0.000000e+00> : vector<8xf32>
    %85 = vector.multi_reduction <add>, %84, %cst_22 [1] : vector<8x8xf32> to vector<8xf32>
    %86 = vector.shape_cast %85 : vector<8xf32> to vector<8x1xf32>
    %87 = tpu.reciprocal %86 {approx = true} : vector<8x1xf32> -> vector<8x1xf32>
    %88 = vector.broadcast %87 : vector<8x1xf32> to vector<8x8xf32>
    %89 = arith.mulf %84, %88 : vector<8x8xf32>
    %90 = arith.truncf %89 : vector<8x8xf32> to vector<8x8xbf16>
    %cst_23 = arith.constant dense<0.000000e+00> : vector<8x8xf32>
    %91 = tpu.matmul %90, %75, %cst_23 {dimension_numbers = #tpu.dot_dimension_numbers<[1], [0], [0], [1], [0, 0, 1, 1], [], []>} : vector<8x8xbf16>, vector<8x8xbf16>, vector<8x8xf32> -> vector<8x8xf32>
    %92 = tpu.concatenate %25, %47, %69, %91 in 1 : vector<8x8xf32>, vector<8x8xf32>, vector<8x8xf32>, vector<8x8xf32> -> vector<8x32xf32>
    %93 = arith.truncf %92 : vector<8x32xf32> to vector<8x32xbf16>
    %c0_24 = arith.constant 0 : index
    %c0_25 = arith.constant 0 : index
    %94 = vector.load %arg3[%c0_24, %c0_25] : memref<32x32xbf16, #tpu.memory_space<vmem>>, vector<32x32xbf16>
    %cst_26 = arith.constant dense<0.000000e+00> : vector<8x32xf32>
    %95 = tpu.matmul %93, %94, %cst_26 {dimension_numbers = #tpu.dot_dimension_numbers<[1], [0], [0], [1], [0, 0, 1, 1], [], []>} : vector<8x32xbf16>, vector<32x32xbf16>, vector<8x32xf32> -> vector<8x32xf32>
    %c0_27 = arith.constant 0 : index
    %c0_28 = arith.constant 0 : index
    %96 = vector.load %arg4[%c0_27, %c0_28] : memref<1x32xf32, #tpu.memory_space<vmem>>, vector<1x32xf32>
    %97 = vector.broadcast %96 : vector<1x32xf32> to vector<8x32xf32>
    %98 = arith.addf %95, %97 : vector<8x32xf32>
    %c0_29 = arith.constant 0 : index
    %c0_30 = arith.constant 0 : index
    %c0_31 = arith.constant 0 : index
    %99 = vector.load %arg5[%c0_29, %c0_30, %c0_31] : memref<1x8x32xf32, #tpu.memory_space<vmem>>, vector<1x8x32xf32>
    %100 = vector.shape_cast %99 : vector<1x8x32xf32> to vector<8x32xf32>
    %101 = vector.shape_cast %98 : vector<8x32xf32> to vector<1x8x32xf32>
    tpu.vector_store %arg5[%c0_29, %c0_30, %c0_31], %101 {strides = array<i32>} : memref<1x8x32xf32, #tpu.memory_space<vmem>>, vector<1x8x32xf32>,
    %102 = math.absf %98 : vector<8x32xf32>
    %cst_32 = arith.constant dense<0xFF800000> : vector<8xf32>
    %103 = vector.multi_reduction <maximumf>, %102, %cst_32 [1] : vector<8x32xf32> to vector<8xf32>
    %104 = vector.shape_cast %103 : vector<8xf32> to vector<8x1xf32>
    %cst_33 = arith.constant dense<0xFF800000> : vector<1xf32>
    %105 = vector.multi_reduction <maximumf>, %104, %cst_33 [0] : vector<8x1xf32> to vector<1xf32>
    %106 = vector.shape_cast %105 : vector<1xf32> to vector<1x1xf32>
    %107 = vector.shape_cast %106 : vector<1x1xf32> to vector<1x1x1xf32>
    %c0_34 = arith.constant 0 : index
    %c0_35 = arith.constant 0 : index
    %c0_36 = arith.constant 0 : index
    %108 = vector.load %arg6[%c0_34, %c0_35, %c0_36] : memref<1x1x1xf32, #tpu.memory_space<vmem>>, vector<1x1x1xf32>
    tpu.vector_store %arg6[%c0_34, %c0_35, %c0_36], %107 {strides = array<i32>} : memref<1x1x1xf32, #tpu.memory_space<vmem>>, vector<1x1x1xf32>,
    return
  }
  func.func @transform_0(%arg0: i32) -> (i32, i32, i32) {
    %c0_i32 = arith.constant 0 : i32
    %c0_i32_0 = arith.constant 0 : i32
    %c0_i32_1 = arith.constant 0 : i32
    return %arg0, %c0_i32, %c0_i32_0 : i32, i32, i32
  }
  func.func @transform_1(%arg0: i32) -> (i32, i32, i32) {
    %c0_i32 = arith.constant 0 : i32
    %c0_i32_0 = arith.constant 0 : i32
    %c0_i32_1 = arith.constant 0 : i32
    %c0_i32_2 = arith.constant 0 : i32
    return %c0_i32, %c0_i32_0, %c0_i32_1 : i32, i32, i32
  }
  func.func @transform_2(%arg0: i32) -> (i32, i32) {
    %c0_i32 = arith.constant 0 : i32
    %c0_i32_0 = arith.constant 0 : i32
    %c0_i32_1 = arith.constant 0 : i32
    return %c0_i32, %c0_i32_0 : i32, i32
  }
  func.func @transform_3(%arg0: i32) -> (i32, i32) {
    %c0_i32 = arith.constant 0 : i32
    %c0_i32_0 = arith.constant 0 : i32
    %c0_i32_1 = arith.constant 0 : i32
    return %c0_i32, %c0_i32_0 : i32, i32
  }
  func.func @transform_4(%arg0: i32) -> (i32, i32, i32) {
    %c0_i32 = arith.constant 0 : i32
    %c0_i32_0 = arith.constant 0 : i32
    %c0_i32_1 = arith.constant 0 : i32
    return %arg0, %c0_i32, %c0_i32_0 : i32, i32, i32
  }
  func.func @transform_5(%arg0: i32) -> (i32, i32, i32) {
    %c0_i32 = arith.constant 0 : i32
    %c0_i32_0 = arith.constant 0 : i32
    %c0_i32_1 = arith.constant 0 : i32
    return %arg0, %c0_i32, %c0_i32_0 : i32, i32, i32
  }
}

module attributes {stable_mosaic.version = 11 : i64} {
  func.func @_ln_residual_kernel(%arg0: i32, %arg1: memref<1xf32, #tpu.memory_space<smem>>, %arg2: memref<16x32xf32, #tpu.memory_space<vmem>>, %arg3: memref<16x32xf32, #tpu.memory_space<vmem>>, %arg4: memref<1x32xf32, #tpu.memory_space<vmem>>, %arg5: memref<1x32xf32, #tpu.memory_space<vmem>>, %arg6: memref<16x32xf32, #tpu.memory_space<vmem>>, %arg7: memref<1x1x1xf32, #tpu.memory_space<vmem>>) attributes {dimension_semantics = [#tpu.dimension_semantics<parallel>], iteration_bounds = array<i64: 1>, scalar_prefetch = 0 : i64, scratch_operands = 0 : i64, tpu.core_type = #tpu.core_type<tc>, window_params = [{transform_indices = @transform_0, window_bounds = array<i64: 1>}, {transform_indices = @transform_1, window_bounds = array<i64: 16, 32>}, {transform_indices = @transform_2, window_bounds = array<i64: 16, 32>}, {pipeline_mode = #tpu.pipeline_mode<synchronous>, transform_indices = @transform_3, window_bounds = array<i64: 1, 32>}, {pipeline_mode = #tpu.pipeline_mode<synchronous>, transform_indices = @transform_4, window_bounds = array<i64: 1, 32>}, {transform_indices = @transform_5, window_bounds = array<i64: 16, 32>}, {transform_indices = @transform_6, window_bounds = array<i64: 1, 1, 1>}]} {
    %c0 = arith.constant 0 : index
    %c0_0 = arith.constant 0 : index
    %0 = vector.load %arg2[%c0, %c0_0] : memref<16x32xf32, #tpu.memory_space<vmem>>, vector<16x32xf32>
    %c0_1 = arith.constant 0 : index
    %1 = memref.load %arg1[%c0_1] : memref<1xf32, #tpu.memory_space<smem>>
    %c0_2 = arith.constant 0 : index
    %c0_3 = arith.constant 0 : index
    %2 = vector.load %arg4[%c0_2, %c0_3] : memref<1x32xf32, #tpu.memory_space<vmem>>, vector<1x32xf32>
    %c0_4 = arith.constant 0 : index
    %c0_5 = arith.constant 0 : index
    %3 = vector.load %arg5[%c0_4, %c0_5] : memref<1x32xf32, #tpu.memory_space<vmem>>, vector<1x32xf32>
    %4 = vector.broadcast %1 : f32 to vector<16x32xf32>
    %5 = arith.mulf %0, %4 : vector<16x32xf32>
    %cst = arith.constant dense<0.000000e+00> : vector<16xf32>
    %6 = vector.multi_reduction <add>, %5, %cst [1] : vector<16x32xf32> to vector<16xf32>
    %7 = vector.shape_cast %6 : vector<16xf32> to vector<16x1xf32>
    %cst_6 = arith.constant 3.200000e+01 : f32
    %8 = vector.broadcast %cst_6 : f32 to vector<16x1xf32>
    %9 = arith.divf %7, %8 : vector<16x1xf32>
    %10 = arith.mulf %5, %5 : vector<16x32xf32>
    %cst_7 = arith.constant dense<0.000000e+00> : vector<16xf32>
    %11 = vector.multi_reduction <add>, %10, %cst_7 [1] : vector<16x32xf32> to vector<16xf32>
    %12 = vector.shape_cast %11 : vector<16xf32> to vector<16x1xf32>
    %cst_8 = arith.constant 3.200000e+01 : f32
    %13 = vector.broadcast %cst_8 : f32 to vector<16x1xf32>
    %14 = arith.divf %12, %13 : vector<16x1xf32>
    %15 = arith.mulf %9, %9 : vector<16x1xf32>
    %16 = arith.subf %14, %15 : vector<16x1xf32>
    %17 = vector.broadcast %9 : vector<16x1xf32> to vector<16x32xf32>
    %18 = arith.subf %5, %17 : vector<16x32xf32>
    %cst_9 = arith.constant 9.99999974E-6 : f32
    %19 = vector.broadcast %cst_9 : f32 to vector<16x1xf32>
    %20 = arith.addf %16, %19 : vector<16x1xf32>
    %21 = math.rsqrt %20 : vector<16x1xf32>
    %22 = vector.broadcast %21 : vector<16x1xf32> to vector<16x32xf32>
    %23 = arith.mulf %18, %22 : vector<16x32xf32>
    %24 = vector.broadcast %2 : vector<1x32xf32> to vector<16x32xf32>
    %25 = arith.mulf %23, %24 : vector<16x32xf32>
    %26 = vector.broadcast %3 : vector<1x32xf32> to vector<16x32xf32>
    %27 = arith.addf %25, %26 : vector<16x32xf32>
    %c0_10 = arith.constant 0 : index
    %c0_11 = arith.constant 0 : index
    %28 = vector.load %arg3[%c0_10, %c0_11] : memref<16x32xf32, #tpu.memory_space<vmem>>, vector<16x32xf32>
    %29 = arith.addf %28, %27 : vector<16x32xf32>
    %c0_12 = arith.constant 0 : index
    %c0_13 = arith.constant 0 : index
    %30 = vector.load %arg6[%c0_12, %c0_13] : memref<16x32xf32, #tpu.memory_space<vmem>>, vector<16x32xf32>
    tpu.vector_store %arg6[%c0_12, %c0_13], %29 {strides = array<i32>} : memref<16x32xf32, #tpu.memory_space<vmem>>, vector<16x32xf32>,
    %31 = math.absf %29 : vector<16x32xf32>
    %cst_14 = arith.constant dense<0xFF800000> : vector<16xf32>
    %32 = vector.multi_reduction <maximumf>, %31, %cst_14 [1] : vector<16x32xf32> to vector<16xf32>
    %33 = vector.shape_cast %32 : vector<16xf32> to vector<16x1xf32>
    %cst_15 = arith.constant dense<0xFF800000> : vector<1xf32>
    %34 = vector.multi_reduction <maximumf>, %33, %cst_15 [0] : vector<16x1xf32> to vector<1xf32>
    %35 = vector.shape_cast %34 : vector<1xf32> to vector<1x1xf32>
    %36 = vector.shape_cast %35 : vector<1x1xf32> to vector<1x1x1xf32>
    %c0_16 = arith.constant 0 : index
    %c0_17 = arith.constant 0 : index
    %c0_18 = arith.constant 0 : index
    %37 = vector.load %arg7[%c0_16, %c0_17, %c0_18] : memref<1x1x1xf32, #tpu.memory_space<vmem>>, vector<1x1x1xf32>
    tpu.vector_store %arg7[%c0_16, %c0_17, %c0_18], %36 {strides = array<i32>} : memref<1x1x1xf32, #tpu.memory_space<vmem>>, vector<1x1x1xf32>,
    return
  }
  func.func @transform_0(%arg0: i32) -> i32 {
    %c0_i32 = arith.constant 0 : i32
    %c0_i32_0 = arith.constant 0 : i32
    return %c0_i32 : i32
  }
  func.func @transform_1(%arg0: i32) -> (i32, i32) {
    %c0_i32 = arith.constant 0 : i32
    %c0_i32_0 = arith.constant 0 : i32
    return %arg0, %c0_i32 : i32, i32
  }
  func.func @transform_2(%arg0: i32) -> (i32, i32) {
    %c0_i32 = arith.constant 0 : i32
    %c0_i32_0 = arith.constant 0 : i32
    return %arg0, %c0_i32 : i32, i32
  }
  func.func @transform_3(%arg0: i32) -> (i32, i32) {
    %c0_i32 = arith.constant 0 : i32
    %c0_i32_0 = arith.constant 0 : i32
    %c0_i32_1 = arith.constant 0 : i32
    return %c0_i32, %c0_i32_0 : i32, i32
  }
  func.func @transform_4(%arg0: i32) -> (i32, i32) {
    %c0_i32 = arith.constant 0 : i32
    %c0_i32_0 = arith.constant 0 : i32
    %c0_i32_1 = arith.constant 0 : i32
    return %c0_i32, %c0_i32_0 : i32, i32
  }
  func.func @transform_5(%arg0: i32) -> (i32, i32) {
    %c0_i32 = arith.constant 0 : i32
    %c0_i32_0 = arith.constant 0 : i32
    return %arg0, %c0_i32 : i32, i32
  }
  func.func @transform_6(%arg0: i32) -> (i32, i32, i32) {
    %c0_i32 = arith.constant 0 : i32
    %c0_i32_0 = arith.constant 0 : i32
    %c0_i32_1 = arith.constant 0 : i32
    return %arg0, %c0_i32, %c0_i32_0 : i32, i32, i32
  }
}

module attributes {stable_mosaic.version = 11 : i64} {
  func.func @_mlp_kernel(%arg0: i32, %arg1: memref<1xf32, #tpu.memory_space<smem>>, %arg2: memref<16x32xf32, #tpu.memory_space<vmem>>, %arg3: memref<1x32xf32, #tpu.memory_space<vmem>>, %arg4: memref<1x32xf32, #tpu.memory_space<vmem>>, %arg5: memref<32x128xbf16, #tpu.memory_space<vmem>>, %arg6: memref<1x128xf32, #tpu.memory_space<vmem>>, %arg7: memref<128x32xbf16, #tpu.memory_space<vmem>>, %arg8: memref<1x32xf32, #tpu.memory_space<vmem>>, %arg9: memref<16x32xf32, #tpu.memory_space<vmem>>, %arg10: memref<1x1x1xf32, #tpu.memory_space<vmem>>) attributes {dimension_semantics = [#tpu.dimension_semantics<parallel>], iteration_bounds = array<i64: 1>, scalar_prefetch = 0 : i64, scratch_operands = 0 : i64, tpu.core_type = #tpu.core_type<tc>, window_params = [{transform_indices = @transform_0, window_bounds = array<i64: 1>}, {transform_indices = @transform_1, window_bounds = array<i64: 16, 32>}, {pipeline_mode = #tpu.pipeline_mode<synchronous>, transform_indices = @transform_2, window_bounds = array<i64: 1, 32>}, {pipeline_mode = #tpu.pipeline_mode<synchronous>, transform_indices = @transform_3, window_bounds = array<i64: 1, 32>}, {pipeline_mode = #tpu.pipeline_mode<synchronous>, transform_indices = @transform_4, window_bounds = array<i64: 32, 128>}, {pipeline_mode = #tpu.pipeline_mode<synchronous>, transform_indices = @transform_5, window_bounds = array<i64: 1, 128>}, {pipeline_mode = #tpu.pipeline_mode<synchronous>, transform_indices = @transform_6, window_bounds = array<i64: 128, 32>}, {pipeline_mode = #tpu.pipeline_mode<synchronous>, transform_indices = @transform_7, window_bounds = array<i64: 1, 32>}, {transform_indices = @transform_8, window_bounds = array<i64: 16, 32>}, {transform_indices = @transform_9, window_bounds = array<i64: 1, 1, 1>}]} {
    %c0 = arith.constant 0 : index
    %c0_0 = arith.constant 0 : index
    %0 = vector.load %arg2[%c0, %c0_0] : memref<16x32xf32, #tpu.memory_space<vmem>>, vector<16x32xf32>
    %c0_1 = arith.constant 0 : index
    %1 = memref.load %arg1[%c0_1] : memref<1xf32, #tpu.memory_space<smem>>
    %c0_2 = arith.constant 0 : index
    %c0_3 = arith.constant 0 : index
    %2 = vector.load %arg3[%c0_2, %c0_3] : memref<1x32xf32, #tpu.memory_space<vmem>>, vector<1x32xf32>
    %c0_4 = arith.constant 0 : index
    %c0_5 = arith.constant 0 : index
    %3 = vector.load %arg4[%c0_4, %c0_5] : memref<1x32xf32, #tpu.memory_space<vmem>>, vector<1x32xf32>
    %4 = vector.broadcast %1 : f32 to vector<16x32xf32>
    %5 = arith.mulf %0, %4 : vector<16x32xf32>
    %cst = arith.constant dense<0.000000e+00> : vector<16xf32>
    %6 = vector.multi_reduction <add>, %5, %cst [1] : vector<16x32xf32> to vector<16xf32>
    %7 = vector.shape_cast %6 : vector<16xf32> to vector<16x1xf32>
    %cst_6 = arith.constant 3.200000e+01 : f32
    %8 = vector.broadcast %cst_6 : f32 to vector<16x1xf32>
    %9 = arith.divf %7, %8 : vector<16x1xf32>
    %10 = arith.mulf %5, %5 : vector<16x32xf32>
    %cst_7 = arith.constant dense<0.000000e+00> : vector<16xf32>
    %11 = vector.multi_reduction <add>, %10, %cst_7 [1] : vector<16x32xf32> to vector<16xf32>
    %12 = vector.shape_cast %11 : vector<16xf32> to vector<16x1xf32>
    %cst_8 = arith.constant 3.200000e+01 : f32
    %13 = vector.broadcast %cst_8 : f32 to vector<16x1xf32>
    %14 = arith.divf %12, %13 : vector<16x1xf32>
    %15 = arith.mulf %9, %9 : vector<16x1xf32>
    %16 = arith.subf %14, %15 : vector<16x1xf32>
    %17 = vector.broadcast %9 : vector<16x1xf32> to vector<16x32xf32>
    %18 = arith.subf %5, %17 : vector<16x32xf32>
    %cst_9 = arith.constant 9.99999974E-6 : f32
    %19 = vector.broadcast %cst_9 : f32 to vector<16x1xf32>
    %20 = arith.addf %16, %19 : vector<16x1xf32>
    %21 = math.rsqrt %20 : vector<16x1xf32>
    %22 = vector.broadcast %21 : vector<16x1xf32> to vector<16x32xf32>
    %23 = arith.mulf %18, %22 : vector<16x32xf32>
    %24 = vector.broadcast %2 : vector<1x32xf32> to vector<16x32xf32>
    %25 = arith.mulf %23, %24 : vector<16x32xf32>
    %26 = vector.broadcast %3 : vector<1x32xf32> to vector<16x32xf32>
    %27 = arith.addf %25, %26 : vector<16x32xf32>
    %28 = arith.truncf %27 : vector<16x32xf32> to vector<16x32xbf16>
    %c0_10 = arith.constant 0 : index
    %c0_11 = arith.constant 0 : index
    %29 = vector.load %arg5[%c0_10, %c0_11] : memref<32x128xbf16, #tpu.memory_space<vmem>>, vector<32x128xbf16>
    %cst_12 = arith.constant dense<0.000000e+00> : vector<16x128xf32>
    %30 = tpu.matmul %28, %29, %cst_12 {dimension_numbers = #tpu.dot_dimension_numbers<[1], [0], [0], [1], [0, 0, 1, 1], [], []>} : vector<16x32xbf16>, vector<32x128xbf16>, vector<16x128xf32> -> vector<16x128xf32>
    %c0_13 = arith.constant 0 : index
    %c0_14 = arith.constant 0 : index
    %31 = vector.load %arg6[%c0_13, %c0_14] : memref<1x128xf32, #tpu.memory_space<vmem>>, vector<1x128xf32>
    %32 = vector.broadcast %31 : vector<1x128xf32> to vector<16x128xf32>
    %33 = arith.addf %30, %32 : vector<16x128xf32>
    %cst_15 = arith.constant 5.000000e-01 : f32
    %34 = vector.broadcast %cst_15 : f32 to vector<16x128xf32>
    %35 = arith.mulf %34, %33 : vector<16x128xf32>
    %cst_16 = arith.constant 0.707106769 : f32
    %36 = vector.broadcast %cst_16 : f32 to vector<16x128xf32>
    %37 = arith.mulf %33, %36 : vector<16x128xf32>
    %cst_17 = arith.constant 0.000000e+00 : f32
    %38 = vector.broadcast %cst_17 : f32 to vector<16x128xf32>
    %39 = arith.cmpf oge, %37, %38 : vector<16x128xf32>
    %cst_18 = arith.constant 1.000000e+00 : f32
    %cst_19 = arith.constant -1.000000e+00 : f32
    %40 = vector.broadcast %cst_18 : f32 to vector<16x128xf32>
    %41 = vector.broadcast %cst_19 : f32 to vector<16x128xf32>
    %42 = arith.select %39, %40, %41 : vector<16x128xi1>, vector<16x128xf32>
    %43 = math.absf %37 : vector<16x128xf32>
    %cst_20 = arith.constant 0.327591091 : f32
    %44 = vector.broadcast %cst_20 : f32 to vector<16x128xf32>
    %45 = arith.mulf %44, %43 : vector<16x128xf32>
    %cst_21 = arith.constant 1.000000e+00 : f32
    %46 = vector.broadcast %cst_21 : f32 to vector<16x128xf32>
    %47 = arith.addf %46, %45 : vector<16x128xf32>
    %cst_22 = arith.constant 1.000000e+00 : f32
    %48 = vector.broadcast %cst_22 : f32 to vector<16x128xf32>
    %49 = arith.divf %48, %47 : vector<16x128xf32>
    %cst_23 = arith.constant 1.06140542 : f32
    %50 = vector.broadcast %cst_23 : f32 to vector<16x128xf32>
    %51 = arith.mulf %50, %49 : vector<16x128xf32>
    %cst_24 = arith.constant -1.45315206 : f32
    %52 = vector.broadcast %cst_24 : f32 to vector<16x128xf32>
    %53 = arith.addf %51, %52 : vector<16x128xf32>
    %54 = arith.mulf %53, %49 : vector<16x128xf32>
    %cst_25 = arith.constant 1.42141378 : f32
    %55 = vector.broadcast %cst_25 : f32 to vector<16x128xf32>
    %56 = arith.addf %54, %55 : vector<16x128xf32>
    %57 = arith.mulf %56, %49 : vector<16x128xf32>
    %cst_26 = arith.constant -0.284496725 : f32
    %58 = vector.broadcast %cst_26 : f32 to vector<16x128xf32>
    %59 = arith.addf %57, %58 : vector<16x128xf32>
    %60 = arith.mulf %59, %49 : vector<16x128xf32>
    %cst_27 = arith.constant 0.254829586 : f32
    %61 = vector.broadcast %cst_27 : f32 to vector<16x128xf32>
    %62 = arith.addf %60, %61 : vector<16x128xf32>
    %63 = arith.mulf %62, %49 : vector<16x128xf32>
    %cst_28 = arith.constant 0.000000e+00 : f32
    %64 = vector.broadcast %cst_28 : f32 to vector<16x128xf32>
    %65 = arith.subf %64, %43 : vector<16x128xf32>
    %66 = arith.mulf %65, %43 : vector<16x128xf32>
    %67 = math.exp %66 : vector<16x128xf32>
    %68 = arith.mulf %63, %67 : vector<16x128xf32>
    %cst_29 = arith.constant 1.000000e+00 : f32
    %69 = vector.broadcast %cst_29 : f32 to vector<16x128xf32>
    %70 = arith.subf %69, %68 : vector<16x128xf32>
    %71 = arith.mulf %42, %70 : vector<16x128xf32>
    %cst_30 = arith.constant 1.000000e+00 : f32
    %72 = vector.broadcast %cst_30 : f32 to vector<16x128xf32>
    %73 = arith.addf %72, %71 : vector<16x128xf32>
    %74 = arith.mulf %35, %73 : vector<16x128xf32>
    %75 = arith.truncf %74 : vector<16x128xf32> to vector<16x128xbf16>
    %c0_31 = arith.constant 0 : index
    %c0_32 = arith.constant 0 : index
    %76 = vector.load %arg7[%c0_31, %c0_32] : memref<128x32xbf16, #tpu.memory_space<vmem>>, vector<128x32xbf16>
    %cst_33 = arith.constant dense<0.000000e+00> : vector<16x32xf32>
    %77 = tpu.matmul %75, %76, %cst_33 {dimension_numbers = #tpu.dot_dimension_numbers<[1], [0], [0], [1], [0, 0, 1, 1], [], []>} : vector<16x128xbf16>, vector<128x32xbf16>, vector<16x32xf32> -> vector<16x32xf32>
    %c0_34 = arith.constant 0 : index
    %c0_35 = arith.constant 0 : index
    %78 = vector.load %arg8[%c0_34, %c0_35] : memref<1x32xf32, #tpu.memory_space<vmem>>, vector<1x32xf32>
    %79 = vector.broadcast %78 : vector<1x32xf32> to vector<16x32xf32>
    %80 = arith.addf %77, %79 : vector<16x32xf32>
    %c0_36 = arith.constant 0 : index
    %c0_37 = arith.constant 0 : index
    %81 = vector.load %arg9[%c0_36, %c0_37] : memref<16x32xf32, #tpu.memory_space<vmem>>, vector<16x32xf32>
    tpu.vector_store %arg9[%c0_36, %c0_37], %80 {strides = array<i32>} : memref<16x32xf32, #tpu.memory_space<vmem>>, vector<16x32xf32>,
    %82 = math.absf %80 : vector<16x32xf32>
    %cst_38 = arith.constant dense<0xFF800000> : vector<16xf32>
    %83 = vector.multi_reduction <maximumf>, %82, %cst_38 [1] : vector<16x32xf32> to vector<16xf32>
    %84 = vector.shape_cast %83 : vector<16xf32> to vector<16x1xf32>
    %cst_39 = arith.constant dense<0xFF800000> : vector<1xf32>
    %85 = vector.multi_reduction <maximumf>, %84, %cst_39 [0] : vector<16x1xf32> to vector<1xf32>
    %86 = vector.shape_cast %85 : vector<1xf32> to vector<1x1xf32>
    %87 = vector.shape_cast %86 : vector<1x1xf32> to vector<1x1x1xf32>
    %c0_40 = arith.constant 0 : index
    %c0_41 = arith.constant 0 : index
    %c0_42 = arith.constant 0 : index
    %88 = vector.load %arg10[%c0_40, %c0_41, %c0_42] : memref<1x1x1xf32, #tpu.memory_space<vmem>>, vector<1x1x1xf32>
    tpu.vector_store %arg10[%c0_40, %c0_41, %c0_42], %87 {strides = array<i32>} : memref<1x1x1xf32, #tpu.memory_space<vmem>>, vector<1x1x1xf32>,
    return
  }
  func.func @transform_0(%arg0: i32) -> i32 {
    %c0_i32 = arith.constant 0 : i32
    %c0_i32_0 = arith.constant 0 : i32
    return %c0_i32 : i32
  }
  func.func @transform_1(%arg0: i32) -> (i32, i32) {
    %c0_i32 = arith.constant 0 : i32
    %c0_i32_0 = arith.constant 0 : i32
    return %arg0, %c0_i32 : i32, i32
  }
  func.func @transform_2(%arg0: i32) -> (i32, i32) {
    %c0_i32 = arith.constant 0 : i32
    %c0_i32_0 = arith.constant 0 : i32
    %c0_i32_1 = arith.constant 0 : i32
    return %c0_i32, %c0_i32_0 : i32, i32
  }
  func.func @transform_3(%arg0: i32) -> (i32, i32) {
    %c0_i32 = arith.constant 0 : i32
    %c0_i32_0 = arith.constant 0 : i32
    %c0_i32_1 = arith.constant 0 : i32
    return %c0_i32, %c0_i32_0 : i32, i32
  }
  func.func @transform_4(%arg0: i32) -> (i32, i32) {
    %c0_i32 = arith.constant 0 : i32
    %c0_i32_0 = arith.constant 0 : i32
    %c0_i32_1 = arith.constant 0 : i32
    return %c0_i32, %c0_i32_0 : i32, i32
  }
  func.func @transform_5(%arg0: i32) -> (i32, i32) {
    %c0_i32 = arith.constant 0 : i32
    %c0_i32_0 = arith.constant 0 : i32
    %c0_i32_1 = arith.constant 0 : i32
    return %c0_i32, %c0_i32_0 : i32, i32
  }
  func.func @transform_6(%arg0: i32) -> (i32, i32) {
    %c0_i32 = arith.constant 0 : i32
    %c0_i32_0 = arith.constant 0 : i32
    %c0_i32_1 = arith.constant 0 : i32
    return %c0_i32, %c0_i32_0 : i32, i32
  }
  func.func @transform_7(%arg0: i32) -> (i32, i32) {
    %c0_i32 = arith.constant 0 : i32
    %c0_i32_0 = arith.constant 0 : i32
    %c0_i32_1 = arith.constant 0 : i32
    return %c0_i32, %c0_i32_0 : i32, i32
  }
  func.func @transform_8(%arg0: i32) -> (i32, i32) {
    %c0_i32 = arith.constant 0 : i32
    %c0_i32_0 = arith.constant 0 : i32
    return %arg0, %c0_i32 : i32, i32
  }
  func.func @transform_9(%arg0: i32) -> (i32, i32, i32) {
    %c0_i32 = arith.constant 0 : i32
    %c0_i32_0 = arith.constant 0 : i32
    %c0_i32_1 = arith.constant 0 : i32
    return %arg0, %c0_i32, %c0_i32_0 : i32, i32, i32
  }
}

module attributes {stable_mosaic.version = 11 : i64} {
  func.func @_ln_residual_kernel(%arg0: i32, %arg1: memref<1xf32, #tpu.memory_space<smem>>, %arg2: memref<16x32xf32, #tpu.memory_space<vmem>>, %arg3: memref<16x32xf32, #tpu.memory_space<vmem>>, %arg4: memref<1x32xf32, #tpu.memory_space<vmem>>, %arg5: memref<1x32xf32, #tpu.memory_space<vmem>>, %arg6: memref<16x32xf32, #tpu.memory_space<vmem>>, %arg7: memref<1x1x1xf32, #tpu.memory_space<vmem>>) attributes {dimension_semantics = [#tpu.dimension_semantics<parallel>], iteration_bounds = array<i64: 1>, scalar_prefetch = 0 : i64, scratch_operands = 0 : i64, tpu.core_type = #tpu.core_type<tc>, window_params = [{transform_indices = @transform_0, window_bounds = array<i64: 1>}, {transform_indices = @transform_1, window_bounds = array<i64: 16, 32>}, {transform_indices = @transform_2, window_bounds = array<i64: 16, 32>}, {pipeline_mode = #tpu.pipeline_mode<synchronous>, transform_indices = @transform_3, window_bounds = array<i64: 1, 32>}, {pipeline_mode = #tpu.pipeline_mode<synchronous>, transform_indices = @transform_4, window_bounds = array<i64: 1, 32>}, {transform_indices = @transform_5, window_bounds = array<i64: 16, 32>}, {transform_indices = @transform_6, window_bounds = array<i64: 1, 1, 1>}]} {
    %c0 = arith.constant 0 : index
    %c0_0 = arith.constant 0 : index
    %0 = vector.load %arg2[%c0, %c0_0] : memref<16x32xf32, #tpu.memory_space<vmem>>, vector<16x32xf32>
    %c0_1 = arith.constant 0 : index
    %1 = memref.load %arg1[%c0_1] : memref<1xf32, #tpu.memory_space<smem>>
    %c0_2 = arith.constant 0 : index
    %c0_3 = arith.constant 0 : index
    %2 = vector.load %arg4[%c0_2, %c0_3] : memref<1x32xf32, #tpu.memory_space<vmem>>, vector<1x32xf32>
    %c0_4 = arith.constant 0 : index
    %c0_5 = arith.constant 0 : index
    %3 = vector.load %arg5[%c0_4, %c0_5] : memref<1x32xf32, #tpu.memory_space<vmem>>, vector<1x32xf32>
    %4 = vector.broadcast %1 : f32 to vector<16x32xf32>
    %5 = arith.mulf %0, %4 : vector<16x32xf32>
    %cst = arith.constant dense<0.000000e+00> : vector<16xf32>
    %6 = vector.multi_reduction <add>, %5, %cst [1] : vector<16x32xf32> to vector<16xf32>
    %7 = vector.shape_cast %6 : vector<16xf32> to vector<16x1xf32>
    %cst_6 = arith.constant 3.200000e+01 : f32
    %8 = vector.broadcast %cst_6 : f32 to vector<16x1xf32>
    %9 = arith.divf %7, %8 : vector<16x1xf32>
    %10 = arith.mulf %5, %5 : vector<16x32xf32>
    %cst_7 = arith.constant dense<0.000000e+00> : vector<16xf32>
    %11 = vector.multi_reduction <add>, %10, %cst_7 [1] : vector<16x32xf32> to vector<16xf32>
    %12 = vector.shape_cast %11 : vector<16xf32> to vector<16x1xf32>
    %cst_8 = arith.constant 3.200000e+01 : f32
    %13 = vector.broadcast %cst_8 : f32 to vector<16x1xf32>
    %14 = arith.divf %12, %13 : vector<16x1xf32>
    %15 = arith.mulf %9, %9 : vector<16x1xf32>
    %16 = arith.subf %14, %15 : vector<16x1xf32>
    %17 = vector.broadcast %9 : vector<16x1xf32> to vector<16x32xf32>
    %18 = arith.subf %5, %17 : vector<16x32xf32>
    %cst_9 = arith.constant 9.99999974E-6 : f32
    %19 = vector.broadcast %cst_9 : f32 to vector<16x1xf32>
    %20 = arith.addf %16, %19 : vector<16x1xf32>
    %21 = math.rsqrt %20 : vector<16x1xf32>
    %22 = vector.broadcast %21 : vector<16x1xf32> to vector<16x32xf32>
    %23 = arith.mulf %18, %22 : vector<16x32xf32>
    %24 = vector.broadcast %2 : vector<1x32xf32> to vector<16x32xf32>
    %25 = arith.mulf %23, %24 : vector<16x32xf32>
    %26 = vector.broadcast %3 : vector<1x32xf32> to vector<16x32xf32>
    %27 = arith.addf %25, %26 : vector<16x32xf32>
    %c0_10 = arith.constant 0 : index
    %c0_11 = arith.constant 0 : index
    %28 = vector.load %arg3[%c0_10, %c0_11] : memref<16x32xf32, #tpu.memory_space<vmem>>, vector<16x32xf32>
    %29 = arith.addf %28, %27 : vector<16x32xf32>
    %c0_12 = arith.constant 0 : index
    %c0_13 = arith.constant 0 : index
    %30 = vector.load %arg6[%c0_12, %c0_13] : memref<16x32xf32, #tpu.memory_space<vmem>>, vector<16x32xf32>
    tpu.vector_store %arg6[%c0_12, %c0_13], %29 {strides = array<i32>} : memref<16x32xf32, #tpu.memory_space<vmem>>, vector<16x32xf32>,
    %31 = math.absf %29 : vector<16x32xf32>
    %cst_14 = arith.constant dense<0xFF800000> : vector<16xf32>
    %32 = vector.multi_reduction <maximumf>, %31, %cst_14 [1] : vector<16x32xf32> to vector<16xf32>
    %33 = vector.shape_cast %32 : vector<16xf32> to vector<16x1xf32>
    %cst_15 = arith.constant dense<0xFF800000> : vector<1xf32>
    %34 = vector.multi_reduction <maximumf>, %33, %cst_15 [0] : vector<16x1xf32> to vector<1xf32>
    %35 = vector.shape_cast %34 : vector<1xf32> to vector<1x1xf32>
    %36 = vector.shape_cast %35 : vector<1x1xf32> to vector<1x1x1xf32>
    %c0_16 = arith.constant 0 : index
    %c0_17 = arith.constant 0 : index
    %c0_18 = arith.constant 0 : index
    %37 = vector.load %arg7[%c0_16, %c0_17, %c0_18] : memref<1x1x1xf32, #tpu.memory_space<vmem>>, vector<1x1x1xf32>
    tpu.vector_store %arg7[%c0_16, %c0_17, %c0_18], %36 {strides = array<i32>} : memref<1x1x1xf32, #tpu.memory_space<vmem>>, vector<1x1x1xf32>,
    return
  }
  func.func @transform_0(%arg0: i32) -> i32 {
    %c0_i32 = arith.constant 0 : i32
    %c0_i32_0 = arith.constant 0 : i32
    return %c0_i32 : i32
  }
  func.func @transform_1(%arg0: i32) -> (i32, i32) {
    %c0_i32 = arith.constant 0 : i32
    %c0_i32_0 = arith.constant 0 : i32
    return %arg0, %c0_i32 : i32, i32
  }
  func.func @transform_2(%arg0: i32) -> (i32, i32) {
    %c0_i32 = arith.constant 0 : i32
    %c0_i32_0 = arith.constant 0 : i32
    return %arg0, %c0_i32 : i32, i32
  }
  func.func @transform_3(%arg0: i32) -> (i32, i32) {
    %c0_i32 = arith.constant 0 : i32
    %c0_i32_0 = arith.constant 0 : i32
    %c0_i32_1 = arith.constant 0 : i32
    return %c0_i32, %c0_i32_0 : i32, i32
  }
  func.func @transform_4(%arg0: i32) -> (i32, i32) {
    %c0_i32 = arith.constant 0 : i32
    %c0_i32_0 = arith.constant 0 : i32
    %c0_i32_1 = arith.constant 0 : i32
    return %c0_i32, %c0_i32_0 : i32, i32
  }
  func.func @transform_5(%arg0: i32) -> (i32, i32) {
    %c0_i32 = arith.constant 0 : i32
    %c0_i32_0 = arith.constant 0 : i32
    return %arg0, %c0_i32 : i32, i32
  }
  func.func @transform_6(%arg0: i32) -> (i32, i32, i32) {
    %c0_i32 = arith.constant 0 : i32
    %c0_i32_0 = arith.constant 0 : i32
    %c0_i32_1 = arith.constant 0 : i32
    return %arg0, %c0_i32, %c0_i32_0 : i32, i32, i32
  }
}

</mosaic_0001>

<llo_original>
// kernel: block_forward.5
$region0: #{block_forward.5}
  #allocation0 [shape = 'u32[]', space=smem, size = 0x4, offset = 0x4, fixed_abs, tag = 'smem constant byte address 0x4 - core index']
  #allocation1 [shape = 'u32[144,128]{1,0:T(1,128)}', space=vmem, size = 0x12000, scoped, tag = 'internal scratch']
  #allocation2 [shape = 'f32[1]{0:T(128)S(6)}', space=smem, size = 0x200, scoped, tag = 'scoped memory for block_forward.5']
  %s0 = inlined_call_operand.<no memory space> [shape: f32[1], index: 0, kind: input, shape index: {}]
  %s1 = inlined_call_operand.vmem [shape: f32[16,32], index: 1, kind: input, shape index: {}]
  %s2 = inlined_call_operand.vmem [shape: f32[1,32], index: 2, kind: input, shape index: {}]
  %s3 = inlined_call_operand.vmem [shape: f32[1,32], index: 3, kind: input, shape index: {}]
  %s4 = inlined_call_operand.vmem [shape: bf16[32,96], index: 4, kind: input, shape index: {}]
  %s5 = inlined_call_operand.vmem [shape: f32[1,96], index: 5, kind: input, shape index: {}]
  %s6 = inlined_call_operand.vmem [shape: f32[16,96], index: 6, kind: output, shape index: {}]
  %s7 = sld [smem:[#allocation0]]
  $region34: #{block_forward.5} parent=0
    _
  %s9 = ssub.s32 1, %s7
  %s10 = scalar_select 0, %s9, %s7
  %11 = sst [smem:[#allocation2]] %s0
  // Predicated region
  $region2: #{block_forward.5} parent=0 // pred_check
    _
  $region3: #{block_forward.5} parent=0 // pred_check_branch
    %13 = sbr.rel (0) target = $region5
  $region4: #{block_forward.5} parent=0 // pred_region
    _
  $region5: #{block_forward.5} parent=0 // pred_fallthru
    _
  // Predicated region
  $region6: #{block_forward.5} parent=0 // pred_check
    _
  $region7: #{block_forward.5} parent=0 // pred_check_branch
    %15 = sbr.rel (0) target = $region9
  $region8: #{block_forward.5} parent=0 // pred_region
    _
  $region9: #{block_forward.5} parent=0 // pred_fallthru
    _
  // Predicated region
  $region10: #{block_forward.5} parent=0 // pred_check
    _
  $region11: #{block_forward.5} parent=0 // pred_check_branch
    %17 = sbr.rel (0) target = $region13
  $region12: #{block_forward.5} parent=0 // pred_region
    _
  $region13: #{block_forward.5} parent=0 // pred_fallthru
    _
  // Predicated region
  $region14: #{block_forward.5} parent=0 // pred_check
    _
  $region15: #{block_forward.5} parent=0 // pred_check_branch
    %19 = sbr.rel (0) target = $region17
  $region16: #{block_forward.5} parent=0 // pred_region
    _
  $region17: #{block_forward.5} parent=0 // pred_fallthru
    _
  // Predicated region
  $region18: #{block_forward.5} parent=0 // pred_check
    _
  $region19: #{block_forward.5} parent=0 // pred_check_branch
    %21 = sbr.rel (0) target = $region21
  $region20: #{block_forward.5} parent=0 // pred_region
    _
  $region21: #{block_forward.5} parent=0 // pred_fallthru
    _
  // Predicated region
  $region22: #{block_forward.5} parent=0 // pred_check
    _
  $region23: #{block_forward.5} parent=0 // pred_check_branch
    %23 = sbr.rel (0) target = $region25
  $region24: #{block_forward.5} parent=0 // pred_region
    _
  $region25: #{block_forward.5} parent=0 // pred_fallthru
    _
  %v25 = vld [vmem:[%s1] sm:$0xff]
  %v26 = vld [vmem:[%s1 + $0x8] sm:$0xff]
  %s27 = sld [smem:[#allocation2]]
  %v28 = vld [vmem:[%s2] sm:$0x1]
  %v29 = vld [vmem:[%s3] sm:$0x1]
  %v30 = vstv %s27
  %v31 = vmul.f32 %v25, %v30
  %v32 = vmul.f32 %v26, %v30
  %vm33 = vcmask 261120
  %v34 = vsel %vm33, %v31, 0.0
  %35 = vadd.xlane.f32.xlu0 %v34
  %v36 = vpop.xlane.xlu0 %35
  %v37 = vsel %vm33, %v32, 0.0
  %38 = vadd.xlane.f32.xlu0 %v37
  %v39 = vpop.xlane.xlu0 %38
  %v40 = vrcp.pop 32.0
  %v41 = vmul.f32 %v36, %v40
  %v42 = vmul.f32 %v39, %v40
  %v43 = vmul.f32 %v31, %v31
  %v44 = vmul.f32 %v32, %v32
  %v45 = vsel %vm33, %v43, 0.0
  %46 = vadd.xlane.f32.xlu0 %v45
  %v47 = vpop.xlane.xlu0 %46
  %v48 = vsel %vm33, %v44, 0.0
  %49 = vadd.xlane.f32.xlu0 %v48
  %v50 = vpop.xlane.xlu0 %49
  %v51 = vmul.f32 %v47, %v40
  %v52 = vmul.f32 %v50, %v40
  %v53 = vmul.f32 %v41, %v41
  %v54 = vmul.f32 %v42, %v42
  %v55 = vsub.f32 %v51, %v53
  %v56 = vsub.f32 %v52, %v54
  %v57 = vsub.f32 %v31, %v41
  %v58 = vsub.f32 %v32, %v42
  %v59 = vadd.f32 %v55, 1e-05
  %v60 = vadd.f32 %v56, 1e-05
  %v61 = vrsqrt.pop %v59
  %v62 = vrsqrt.pop %v60
  %v63 = vmul.f32 %v57, %v61
  %v64 = vmul.f32 %v58, %v62
  %v66 = vlaneseq
  %v67 = vshrl.u32 %v66, 7
  %v68 = vsub.s32 0, %v67
  %v69 = vrot.slane %v28, %v68
  %v71 = vmul.f32 %v63, %v69
  %v72 = vmul.f32 %v64, %v69
  %v74 = vlaneseq
  %v75 = vshrl.u32 %v74, 7
  %v76 = vsub.s32 0, %v75
  %v77 = vrot.slane %v29, %v76
  %v79 = vadd.f32 %v71, %v77
  %v80 = vadd.f32 %v72, %v77
  %v81 = vpack.c.bf16 %v80, %v79
  %v82 = vld [vmem:[%s4] sm:$0xf]
  %v83 = vld [vmem:[%s4 + $0x4] sm:$0xf]
  %v84 = vld [vmem:[%s4 + $0x8] sm:$0xf]
  %v85 = vld [vmem:[%s4 + $0xc] sm:$0xf]
  %v86 = vld [vmem:[%s5] sm:$0x1]
  %v88 = vlaneseq
  %v89 = vshrl.u32 %v88, 7
  %v90 = vsub.s32 0, %v89
  %v91 = vrot.slane %v86, %v90
  %v97 = vunpack.c.l.b16 %v82
  %v98 = vunpack.c.l.b16 %v83
  %v99 = vunpack.c.l.b16 %v84
  %v100 = vunpack.c.l.b16 %v85
  %v101 = vpack.c.b16 %v98, %v97
  %v102 = vpack.c.b16 %v100, %v99
  %v106 = vsel %vm33, %v81, 0
  %108 = vmatprep.subr.bf16.mxu0 0
  %109 = vmatpush1.bf16.msra.mxu0 0
  %110 = vmatprep.subr.bf16.mxu0 0
  %111 = vmatpush1.bf16.msra.mxu0 0
  %112 = vmatprep.subr.bf16.mxu0 0
  %113 = vmatpush1.bf16.msra.mxu0 0
  %114 = vmatprep.subr.bf16.mxu0 0
  %115 = vmatpush1.bf16.msra.mxu0 0
  %116 = vmatprep.subr.bf16.mxu0 0
  %117 = vmatpush1.bf16.msra.mxu0 0
  %118 = vmatprep.subr.bf16.mxu0 0
  %119 = vmatpush1.bf16.msra.mxu0 0
  %120 = vmatprep.subr.bf16.mxu0 0
  %121 = vmatpush1.bf16.msra.mxu0 %v102
  %122 = vmatprep.subr.bf16.mxu0 0
  %123 = vmatpush1.bf16.msra.mxu0 %v101
  %124 = vmatprep.subr.bf16.mxu0 0
  %125 = vmatpush2.bf16.msra.mxu0 0
  %126 = vmatprep.subr.bf16.mxu0 0
  %127 = vmatpush2.bf16.msra.mxu0 0
  %128 = vmatprep.subr.bf16.mxu0 0
  %129 = vmatpush2.bf16.msra.mxu0 0
  %130 = vmatprep.subr.bf16.mxu0 0
  %131 = vmatpush2.bf16.msra.mxu0 0
  %132 = vmatprep.subr.bf16.mxu0 0
  %133 = vmatpush2.bf16.msra.mxu0 0
  %134 = vmatprep.subr.bf16.mxu0 0
  %135 = vmatpush2.bf16.msra.mxu0 0
  %136 = vmatprep.subr.bf16.mxu0 0
  %137 = vmatpush2.bf16.msra.mxu0 0
  %138 = vmatprep.subr.bf16.mxu0 0
  %139 = vmatpush2.bf16.msra.mxu0 0
  %140 = vmatprep.mubr.bf16.mxu0 0
  %141 = vmatmul.mubr.bf16.gmra.mxu0 %v106
  %v142 = vpop.f32.mrf.mxu0
  %v143 = vadd.f32 %v91, %v142
  %v144 = vpop.f32.mrf.mxu0
  %v145 = vpop.f32.mrf.mxu0
  %v146 = vadd.f32 %v91, %v145
  %v147 = vpop.f32.mrf.mxu0
  %148 = vdwg.mxu0
  %vm149 = vcmask 785408
  %150 = vst.msk [vmem:[%s6] sm:$0xff] %vm149, %v143
  %151 = vst.msk [vmem:[%s6 + $0x8] sm:$0xff] %vm149, %v146
  // Predicated region
  $region26: #{block_forward.5} parent=0 // pred_check
    _
  $region27: #{block_forward.5} parent=0 // pred_check_branch
    %153 = sbr.rel (0) target = $region29
  $region28: #{block_forward.5} parent=0 // pred_region
    _
  $region29: #{block_forward.5} parent=0 // pred_fallthru
    _
  // Predicated region
  $region30: #{block_forward.5} parent=0 // pred_check
    _
  $region31: #{block_forward.5} parent=0 // pred_check_branch
    %155 = sbr.rel (0) target = $region33
  $region32: #{block_forward.5} parent=0 // pred_region
    _
  $region33: #{block_forward.5} parent=0 // pred_fallthru
    _

// kernel: block_forward.7
$region0: #{block_forward.7}
  #allocation0 [shape = 'u32[]', space=smem, size = 0x4, offset = 0x4, fixed_abs, tag = 'smem constant byte address 0x4 - core index']
  #allocation1 [shape = 'u32[144,128]{1,0:T(1,128)}', space=vmem, size = 0x12000, scoped, tag = 'internal scratch']
  #allocation2 [shape = 'f32[1]{0:T(128)S(6)}', space=smem, size = 0x200, scoped, tag = 'scoped memory for block_forward.7']
  %s0 = inlined_call_operand.<no memory space> [shape: f32[1], index: 0, kind: input, shape index: {}]
  %s1 = inlined_call_operand.vmem [shape: f32[16,32], index: 1, kind: input, shape index: {}]
  %s2 = inlined_call_operand.vmem [shape: f32[16,32], index: 2, kind: input, shape index: {}]
  %s3 = inlined_call_operand.vmem [shape: f32[1,32], index: 3, kind: input, shape index: {}]
  %s4 = inlined_call_operand.vmem [shape: f32[1,32], index: 4, kind: input, shape index: {}]
  %s5 = inlined_call_operand.vmem [shape: f32[16,32], index: 5, kind: output, shape index: {0}]
  %s6 = inlined_call_operand.hbm [shape: f32[1,1,1], index: 6, kind: output, shape index: {1}]
  %7 = xla_tuple %s5, %s6
  %s8 = sld [smem:[#allocation0]]
  $region38: #{block_forward.7} parent=0
    _
  %s10 = ssub.s32 1, %s8
  %s11 = scalar_select 0, %s10, %s8
  %12 = sst [smem:[#allocation2]] %s0
  $region1: #{block_forward.7} parent=0
    #allocation3 [shape = 'u8[512]{0}', space=vmem, size = 0x400, scoped, tag = 'output window, operand 1, single buffered']
    #allocation4 [shape = 's32[1]{0}', space=sflag, size = 0x4, scoped, tag = 'scoped memory for block_forward.7']
    %13 = vsyncpa [#allocation4], 0
    // Predicated region
    $region2: #{block_forward.7} parent=1 // pred_check
      _
    $region3: #{block_forward.7} parent=1 // pred_check_branch
      %15 = sbr.rel (0) target = $region5
    $region4: #{block_forward.7} parent=1 // pred_region
      _
    $region5: #{block_forward.7} parent=1 // pred_fallthru
      _
    // Predicated region
    $region6: #{block_forward.7} parent=1 // pred_check
      _
    $region7: #{block_forward.7} parent=1 // pred_check_branch
      %17 = sbr.rel (0) target = $region9
    $region8: #{block_forward.7} parent=1 // pred_region
      _
    $region9: #{block_forward.7} parent=1 // pred_fallthru
      _
    // Predicated region
    $region10: #{block_forward.7} parent=1 // pred_check
      _
    $region11: #{block_forward.7} parent=1 // pred_check_branch
      %19 = sbr.rel (0) target = $region13
    $region12: #{block_forward.7} parent=1 // pred_region
      _
    $region13: #{block_forward.7} parent=1 // pred_fallthru
      _
    // Predicated region
    $region14: #{block_forward.7} parent=1 // pred_check
      _
    $region15: #{block_forward.7} parent=1 // pred_check_branch
      %21 = sbr.rel (0) target = $region17
    $region16: #{block_forward.7} parent=1 // pred_region
      _
    $region17: #{block_forward.7} parent=1 // pred_fallthru
      _
    // Predicated region
    $region18: #{block_forward.7} parent=1 // pred_check
      _
    $region19: #{block_forward.7} parent=1 // pred_check_branch
      %23 = sbr.rel (0) target = $region21
    $region20: #{block_forward.7} parent=1 // pred_region
      _
    $region21: #{block_forward.7} parent=1 // pred_fallthru
      _
    %v24 = vld [vmem:[%s1] sm:$0xff]
    %v25 = vld [vmem:[%s1 + $0x8] sm:$0xff]
    %s26 = sld [smem:[#allocation2]]
    %v27 = vld [vmem:[%s3] sm:$0x1]
    %v28 = vld [vmem:[%s4] sm:$0x1]
    %v29 = vstv %s26
    %v30 = vmul.f32 %v24, %v29
    %v31 = vmul.f32 %v25, %v29
    %vm32 = vcmask 261120
    %v33 = vsel %vm32, %v30, 0.0
    %34 = vadd.xlane.f32.xlu0 %v33
    %v35 = vpop.xlane.xlu0 %34
    %v36 = vsel %vm32, %v31, 0.0
    %37 = vadd.xlane.f32.xlu0 %v36
    %v38 = vpop.xlane.xlu0 %37
    %v39 = vrcp.pop 32.0
    %v40 = vmul.f32 %v35, %v39
    %v41 = vmul.f32 %v38, %v39
    %v42 = vmul.f32 %v30, %v30
    %v43 = vmul.f32 %v31, %v31
    %v44 = vsel %vm32, %v42, 0.0
    %45 = vadd.xlane.f32.xlu0 %v44
    %v46 = vpop.xlane.xlu0 %45
    %v47 = vsel %vm32, %v43, 0.0
    %48 = vadd.xlane.f32.xlu0 %v47
    %v49 = vpop.xlane.xlu0 %48
    %v50 = vmul.f32 %v46, %v39
    %v51 = vmul.f32 %v49, %v39
    %v52 = vmul.f32 %v40, %v40
    %v53 = vmul.f32 %v41, %v41
    %v54 = vsub.f32 %v50, %v52
    %v55 = vsub.f32 %v51, %v53
    %v56 = vsub.f32 %v30, %v40
    %v57 = vsub.f32 %v31, %v41
    %v58 = vadd.f32 %v54, 1e-05
    %v59 = vadd.f32 %v55, 1e-05
    %v60 = vrsqrt.pop %v58
    %v61 = vrsqrt.pop %v59
    %v62 = vmul.f32 %v56, %v60
    %v63 = vmul.f32 %v57, %v61
    %v65 = vlaneseq
    %v66 = vshrl.u32 %v65, 7
    %v67 = vsub.s32 0, %v66
    %v68 = vrot.slane %v27, %v67
    %v70 = vmul.f32 %v62, %v68
    %v71 = vmul.f32 %v63, %v68
    %v73 = vlaneseq
    %v74 = vshrl.u32 %v73, 7
    %v75 = vsub.s32 0, %v74
    %v76 = vrot.slane %v28, %v75
    %v78 = vadd.f32 %v70, %v76
    %v79 = vadd.f32 %v71, %v76
    %v80 = vld [vmem:[%s2] sm:$0xff]
    %v81 = vld [vmem:[%s2 + $0x8] sm:$0xff]
    %v82 = vadd.f32 %v80, %v78
    %v83 = vadd.f32 %v81, %v79
    %84 = vst.msk [vmem:[%s5] sm:$0xff] %vm32, %v82
    %85 = vst.msk [vmem:[%s5 + $0x8] sm:$0xff] %vm32, %v83
    %v86 = vand.u32 2147483647, %v82
    %v87 = vand.u32 2147483647, %v83
    %v88 = vsel %vm32, %v86, -inf
    %89 = vmax.xlane.f32.xlu0 %v88
    %v90 = vpop.xlane.xlu0 %89
    %v91 = vsel %vm32, %v87, -inf
    %92 = vmax.xlane.f32.xlu0 %v91
    %v93 = vpop.xlane.xlu0 %92
    %v94 = vmax.f32 %v90, %v93
    %v95 = vrot.slane %v94, 4
    %v96 = vmax.f32 %v94, %v95
    %v97 = vrot.slane %v96, 2
    %v98 = vmax.f32 %v96, %v97
    %v99 = vrot.slane %v98, 1
    %v100 = vmax.f32 %v98, %v99
    %vm101 = vcmask 0
    %102 = vst.msk [vmem:[#allocation3] sm:$0x1] %vm101, %v100
    // Predicated region
    $region22: #{block_forward.7} parent=1 // pred_check
      _
    $region23: #{block_forward.7} parent=1 // pred_check_branch
      %104 = sbr.rel (0) target = $region25
    $region24: #{block_forward.7} parent=1 // pred_region
      _
    $region25: #{block_forward.7} parent=1 // pred_fallthru
      _
    // Predicated region
    $region26: #{block_forward.7} parent=1 // pred_check
      _
    $region27: #{block_forward.7} parent=1 // pred_check_branch
      %106 = sbr.rel (0) target = $region29
    $region28: #{block_forward.7} parent=1 // pred_region
      %s108 = ssub.s32 16, 16
      %109 = vsyncadd [#allocation4], %s108
      %s111 = sshll.u32 [#allocation3], 4
      %s112 = int_to_ptr.vmem [resolvable:$true] %s111
      %114 = dma.vmem_to_hbm [thread:$0]  %s112, 16, %s6, [#allocation4]
    $region29: #{block_forward.7} parent=1 // pred_fallthru
      _
    // Predicated region
    $region30: #{block_forward.7} parent=1 // pred_check
      _
    $region31: #{block_forward.7} parent=1 // pred_check_branch
      %116 = sbr.rel (0) target = $region33
    $region32: #{block_forward.7} parent=1 // pred_region
      _
    $region33: #{block_forward.7} parent=1 // pred_fallthru
      _
    // Predicated region
    $region34: #{block_forward.7} parent=1 // pred_check
      _
    $region35: #{block_forward.7} parent=1 // pred_check_branch
      %118 = sbr.rel (0) target = $region37
    $region36: #{block_forward.7} parent=1 // pred_region
      %119 = dma.done [#allocation4], 16
    $region37: #{block_forward.7} parent=1 // pred_fallthru
      _
    %120 = vsyncpa [#allocation4], 1

// kernel: block_forward.6
$region0: #{block_forward.6}
  #allocation0 [shape = 'u32[]', space=smem, size = 0x4, offset = 0x4, fixed_abs, tag = 'smem constant byte address 0x4 - core index']
  #allocation1 [shape = 'u32[144,128]{1,0:T(1,128)}', space=vmem, size = 0x12000, scoped, tag = 'internal scratch']
  %s0 = inlined_call_operand.vmem [shape: f32[2,8,96], index: 0, kind: input, shape index: {}]
  %s1 = inlined_call_operand.vmem [shape: f32[1,8,8], index: 1, kind: input, shape index: {}]
  %s2 = inlined_call_operand.vmem [shape: bf16[32,32], index: 2, kind: input, shape index: {}]
  %s3 = inlined_call_operand.vmem [shape: f32[1,32], index: 3, kind: input, shape index: {}]
  %s4 = inlined_call_operand.vmem [shape: f32[2,8,32], index: 4, kind: output, shape index: {0}]
  %s5 = inlined_call_operand.vmem [shape: f32[2,1,1], index: 5, kind: output, shape index: {1}]
  %6 = xla_tuple %s4, %s5
  %s7 = sld [smem:[#allocation0]]
  $region57: #{block_forward.6} parent=0
    _
  %s9 = ssub.s32 1, %s7
  %s10 = scalar_select 0, %s9, %s7
  loop: start=0, step=1, limit=4
  $region2: #{block_forward.6} parent=0 // loop_pre_header
    _
  $region3: #{block_forward.6} parent=0 // loop_header
    %s12 = sphi 0, %s16
    %p13 = scmp.ge.s32.totalorder %s12, 4
    %s22 = sphi 0, %s24
    %s25 = sphi 0, %s22
    %s26 = sphi 0, %s25
    %s42 = sphi 0, %s26
    %s46 = sphi 0, %s46
    %s48 = sphi 0, %s46
    %s49 = sphi 0, %s48
    %s63 = sphi 0, %s49
    %s67 = sphi 0, %s67
    %s69 = sphi 0, %s67
    %s70 = sphi 0, %s69
    %s84 = sphi 0, %s70
    %s88 = sphi 0, %s88
    %s90 = sphi 0, %s88
    %s91 = sphi 0, %s90
    %s105 = sphi 0, %s91
    %s111 = sphi 0, %s113
    %s114 = sphi 0, %s111
    %s115 = sphi 0, %s114
    %s131 = sphi 0, %s115
    %s137 = sphi 0, %s139
    %s140 = sphi 0, %s137
    %s141 = sphi 0, %s140
    %s157 = sphi 0, %s141
  $region4: #{block_forward.6} parent=0 // loop_header_branch
    %15 = sbr.rel (%p13) target = $region8
  $region5: #{block_forward.6} parent=0 // loop_body
    %s17 = ssub.s32 %s12, 1
    %s18 = ssub.s32 %s12, 2
    %s19 = sadd.s32 %s12, 1
    %s20 = ssub.s32 %s12, %s19
    %p21 = scmp.eq.s32.totalorder %s20, 0
    %s23 = sadd.s32 %s22, 1
    %s24 = scalar_select %p21, %s22, %s23
    %p27 = pneg %p21
    %p28 = scmp.eq.s32.totalorder %s12, 1
    %p29 = por %p27, %p28
    %p30 = scmp.ne.s32.totalorder %s22, %s25
    %p31 = scmp.eq.s32.totalorder %s12, 0
    %p32 = por %p30, %p31
    %p33 = scmp.ne.s32.totalorder %s22, %s25
    %p34 = scmp.eq.s32.totalorder %s17, 1
    %p35 = por %p33, %p34
    %p36 = scmp.ne.s32.totalorder %s25, %s26
    %p37 = scmp.eq.s32.totalorder %s17, 0
    %p38 = por %p36, %p37
    %p39 = scmp.ne.s32.totalorder %s25, %s26
    %p40 = scmp.eq.s32.totalorder %s18, 1
    %p41 = por %p39, %p40
    %p43 = scmp.ne.s32.totalorder %s26, %s42
    %p44 = scmp.eq.s32.totalorder %s18, 0
    %p45 = por %p43, %p44
    %s47 = sadd.s32 %s46, 1
    %p50 = scmp.eq.s32.totalorder %s12, 1
    %p51 = scmp.ne.s32.totalorder %s46, %s48
    %p52 = scmp.eq.s32.totalorder %s12, 0
    %p53 = por %p51, %p52
    %p54 = scmp.ne.s32.totalorder %s46, %s48
    %p55 = scmp.eq.s32.totalorder %s17, 1
    %p56 = por %p54, %p55
    %p57 = scmp.ne.s32.totalorder %s48, %s49
    %p58 = scmp.eq.s32.totalorder %s17, 0
    %p59 = por %p57, %p58
    %p60 = scmp.ne.s32.totalorder %s48, %s49
    %p61 = scmp.eq.s32.totalorder %s18, 1
    %p62 = por %p60, %p61
    %p64 = scmp.ne.s32.totalorder %s49, %s63
    %p65 = scmp.eq.s32.totalorder %s18, 0
    %p66 = por %p64, %p65
    %s68 = sadd.s32 %s67, 1
    %p71 = scmp.eq.s32.totalorder %s12, 1
    %p72 = scmp.ne.s32.totalorder %s67, %s69
    %p73 = scmp.eq.s32.totalorder %s12, 0
    %p74 = por %p72, %p73
    %p75 = scmp.ne.s32.totalorder %s67, %s69
    %p76 = scmp.eq.s32.totalorder %s17, 1
    %p77 = por %p75, %p76
    %p78 = scmp.ne.s32.totalorder %s69, %s70
    %p79 = scmp.eq.s32.totalorder %s17, 0
    %p80 = por %p78, %p79
    %p81 = scmp.ne.s32.totalorder %s69, %s70
    %p82 = scmp.eq.s32.totalorder %s18, 1
    %p83 = por %p81, %p82
    %p85 = scmp.ne.s32.totalorder %s70, %s84
    %p86 = scmp.eq.s32.totalorder %s18, 0
    %p87 = por %p85, %p86
    %s89 = sadd.s32 %s88, 1
    %p92 = scmp.eq.s32.totalorder %s12, 1
    %p93 = scmp.ne.s32.totalorder %s88, %s90
    %p94 = scmp.eq.s32.totalorder %s12, 0
    %p95 = por %p93, %p94
    %p96 = scmp.ne.s32.totalorder %s88, %s90
    %p97 = scmp.eq.s32.totalorder %s17, 1
    %p98 = por %p96, %p97
    %p99 = scmp.ne.s32.totalorder %s90, %s91
    %p100 = scmp.eq.s32.totalorder %s17, 0
    %p101 = por %p99, %p100
    %p102 = scmp.ne.s32.totalorder %s90, %s91
    %p103 = scmp.eq.s32.totalorder %s18, 1
    %p104 = por %p102, %p103
    %p106 = scmp.ne.s32.totalorder %s91, %s105
    %p107 = scmp.eq.s32.totalorder %s18, 0
    %p108 = por %p106, %p107
    %s109 = ssub.s32 %s12, %s19
    %p110 = scmp.eq.s32.totalorder %s109, 0
    %s112 = sadd.s32 %s111, 1
    %s113 = scalar_select %p110, %s111, %s112
    %p116 = pneg %p110
    %p117 = scmp.eq.s32.totalorder %s12, 1
    %p118 = por %p116, %p117
    %p119 = scmp.ne.s32.totalorder %s111, %s114
    %p120 = scmp.eq.s32.totalorder %s12, 0
    %p121 = por %p119, %p120
    %p122 = scmp.ne.s32.totalorder %s111, %s114
    %p123 = scmp.eq.s32.totalorder %s17, 1
    %p124 = por %p122, %p123
    %p125 = scmp.ne.s32.totalorder %s114, %s115
    %p126 = scmp.eq.s32.totalorder %s17, 0
    %p127 = por %p125, %p126
    %p128 = scmp.ne.s32.totalorder %s114, %s115
    %p129 = scmp.eq.s32.totalorder %s18, 1
    %p130 = por %p128, %p129
    %p132 = scmp.ne.s32.totalorder %s115, %s131
    %p133 = scmp.eq.s32.totalorder %s18, 0
    %p134 = por %p132, %p133
    %s135 = ssub.s32 %s12, %s19
    %p136 = scmp.eq.s32.totalorder %s135, 0
    %s138 = sadd.s32 %s137, 1
    %s139 = scalar_select %p136, %s137, %s138
    %p142 = pneg %p136
    %p143 = scmp.eq.s32.totalorder %s12, 1
    %p144 = por %p142, %p143
    %p145 = scmp.ne.s32.totalorder %s137, %s140
    %p146 = scmp.eq.s32.totalorder %s12, 0
    %p147 = por %p145, %p146
    %p148 = scmp.ne.s32.totalorder %s137, %s140
    %p149 = scmp.eq.s32.totalorder %s17, 1
    %p150 = por %p148, %p149
    %p151 = scmp.ne.s32.totalorder %s140, %s141
    %p152 = scmp.eq.s32.totalorder %s17, 0
    %p153 = por %p151, %p152
    %p154 = scmp.ne.s32.totalorder %s140, %s141
    %p155 = scmp.eq.s32.totalorder %s18, 1
    %p156 = por %p154, %p155
    %p158 = scmp.ne.s32.totalorder %s141, %s157
    %p159 = scmp.eq.s32.totalorder %s18, 0
    %p160 = por %p158, %p159
    %p161 = scmp.le.s32.totalorder 1, %s12
    %p162 = scmp.lt.s32.totalorder %s12, 3
    %p163 = pnand %p161, %p162
    %p164 = pneg %p163
    // Predicated region
    $region9: #{block_forward.6} parent=5 // pred_check
      _
    $region10: #{block_forward.6} parent=5 // pred_check_branch
      %166 = sbr.rel (%p163) target = $region12
    $region11: #{block_forward.6} parent=5 // pred_region
      %s167 = ssub.s32 %s12, 1
      // Predicated region
      $region13: #{block_forward.6} parent=11 // pred_check
        %p168 = pneg %p59
      $region14: #{block_forward.6} parent=11 // pred_check_branch
        %170 = sbr.rel (%p168) target = $region16
      $region15: #{block_forward.6} parent=11 // pred_region
        _
      $region16: #{block_forward.6} parent=11 // pred_fallthru
        _
      // Predicated region
      $region17: #{block_forward.6} parent=11 // pred_check
        %p171 = pneg %p80
      $region18: #{block_forward.6} parent=11 // pred_check_branch
        %173 = sbr.rel (%p171) target = $region20
      $region19: #{block_forward.6} parent=11 // pred_region
        _
      $region20: #{block_forward.6} parent=11 // pred_fallthru
        _
      // Predicated region
      $region21: #{block_forward.6} parent=11 // pred_check
        %p174 = pneg %p101
      $region22: #{block_forward.6} parent=11 // pred_check_branch
        %176 = sbr.rel (%p174) target = $region24
      $region23: #{block_forward.6} parent=11 // pred_region
        _
      $region24: #{block_forward.6} parent=11 // pred_fallthru
        _
    $region12: #{block_forward.6} parent=5 // pred_fallthru
      _
    %p177 = scmp.lt.s32.totalorder %s12, 2
    // Predicated region
    $region25: #{block_forward.6} parent=5 // pred_check
      %p178 = pneg %p177
    $region26: #{block_forward.6} parent=5 // pred_check_branch
      %180 = sbr.rel (%p178) target = $region28
    $region27: #{block_forward.6} parent=5 // pred_region
      // Predicated region
      $region29: #{block_forward.6} parent=27 // pred_check
        %p181 = pneg %p32
      $region30: #{block_forward.6} parent=27 // pred_check_branch
        %183 = sbr.rel (%p181) target = $region32
      $region31: #{block_forward.6} parent=27 // pred_region
        %p184 = scmp.lt.s32.totalorder %s12, 1
        %s185 = scalar_select %p184, %s12, 1
        %s186 = smul.addr %s185, 8
        %s187 = scalar_lea.vmem %s0, %s186
      $region32: #{block_forward.6} parent=27 // pred_fallthru
        _
    $region28: #{block_forward.6} parent=5 // pred_fallthru
      _
    %p188 = scmp.le.s32.totalorder 1, %s12
    %p189 = scmp.lt.s32.totalorder %s12, 3
    %p190 = pnand %p188, %p189
    %p191 = pneg %p190
    // Predicated region
    $region33: #{block_forward.6} parent=5 // pred_check
      _
    $region34: #{block_forward.6} parent=5 // pred_check_branch
      %193 = sbr.rel (%p190) target = $region36
    $region35: #{block_forward.6} parent=5 // pred_region
      %s194 = ssub.s32 %s12, 1
      %p195 = scmp.lt.s32.totalorder %s17, 1
      %s196 = scalar_select %p195, %s17, 1
      %s197 = smul.addr %s196, 8
      %s198 = scalar_lea.vmem %s0, %s197
      %p199 = pneg %p38
      %p200 = pneg %p35
      %p201 = pneg %p59
      %p202 = pneg %p56
      %p203 = pneg %p80
      %p204 = pneg %p77
      %p205 = pneg %p101
      %p206 = pneg %p98
      %p207 = pneg %p127
      %p208 = pneg %p124
      %p209 = scmp.lt.s32.totalorder %s17, 1
      %s210 = scalar_select %p209, %s17, 1
      %s211 = smul.addr %s210, 8
      %s212 = scalar_lea.vmem %s4, %s211
      %p213 = pneg %p153
      %p214 = pneg %p150
      %p215 = scmp.lt.s32.totalorder %s17, 1
      %s216 = scalar_select %p215, %s17, 1
      %s217 = scalar_lea.vmem %s5, %s216
      %p218 = scmp.lt.s32.totalorder %s17, 1
      %s219 = scalar_select %p218, %s17, 1
      %s220 = smul.addr %s219, 8
      %s221 = scalar_lea.vmem %s0, %s220
      %p222 = scmp.lt.s32.totalorder %s17, 1
      %s223 = scalar_select %p222, %s17, 1
      %s224 = smul.addr %s223, 8
      %s225 = scalar_lea.vmem %s4, %s224
      %p226 = scmp.lt.s32.totalorder %s17, 1
      %s227 = scalar_select %p226, %s17, 1
      %s228 = scalar_lea.vmem %s5, %s227
      %v230 = vld [vmem:[%s221] sm:$0xff]
      %v231 = vld [vmem:[%s1] sm:$0xff]
      %v232 = vpack.c.bf16 %v230, %v230
      %234 = vrot.lane.b32.xlu0 %v232, 96
      %v235 = vpop.permute.xlu0 %234
      %vm236 = vcmask 64512
      %v238 = vsel %vm236, %v232, 0
      %v241 = vsel %vm236, %v235, 0
      %243 = vmatprep.subr.bf16.mxu0 0
      %244 = vmatpush1.bf16.xpose.msra.mxu0 0
      %245 = vmatprep.subr.bf16.mxu0 0
      %246 = vmatpush1.bf16.xpose.msra.mxu0 0
      %247 = vmatprep.subr.bf16.mxu0 0
      %248 = vmatpush1.bf16.xpose.msra.mxu0 0
      %249 = vmatprep.subr.bf16.mxu0 0
      %250 = vmatpush1.bf16.xpose.msra.mxu0 0
      %251 = vmatprep.subr.bf16.mxu0 0
      %252 = vmatpush1.bf16.xpose.msra.mxu0 0
      %253 = vmatprep.subr.bf16.mxu0 0
      %254 = vmatpush1.bf16.xpose.msra.mxu0 0
      %255 = vmatprep.subr.bf16.mxu0 0
      %256 = vmatpush1.bf16.xpose.msra.mxu0 0
      %257 = vmatprep.subr.bf16.mxu0 0
      %258 = vmatpush1.bf16.xpose.msra.mxu0 %v241
      %259 = vmatprep.subr.bf16.mxu0 0
      %260 = vmatpush2.bf16.xpose.msra.mxu0 0
      %261 = vmatprep.subr.bf16.mxu0 0
      %262 = vmatpush2.bf16.xpose.msra.mxu0 0
      %263 = vmatprep.subr.bf16.mxu0 0
      %264 = vmatpush2.bf16.xpose.msra.mxu0 0
      %265 = vmatprep.subr.bf16.mxu0 0
      %266 = vmatpush2.bf16.xpose.msra.mxu0 0
      %267 = vmatprep.subr.bf16.mxu0 0
      %268 = vmatpush2.bf16.xpose.msra.mxu0 0
      %269 = vmatprep.subr.bf16.mxu0 0
      %270 = vmatpush2.bf16.xpose.msra.mxu0 0
      %271 = vmatprep.subr.bf16.mxu0 0
      %272 = vmatpush2.bf16.xpose.msra.mxu0 0
      %273 = vmatprep.subr.bf16.mxu0 0
      %274 = vmatpush2.bf16.xpose.msra.mxu0 0
      %275 = vmatprep.mubr.bf16.mxu0 0
      %276 = vmatmul.mubr.bf16.gmra.mxu0 %v238
      %v277 = vpop.f32.mrf.mxu0
      %v278 = vadd.f32 0.0, %v277
      %v279 = vpop.f32.mrf.mxu0
      %v280 = vpop.f32.mrf.mxu0
      %v281 = vpop.f32.mrf.mxu0
      %282 = vdwg.mxu0
      %v283 = vmul.f32 %v278, 0.35355338
      %v284 = vadd.f32 %v283, %v231
      %v285 = vsel %vm236, %v284, -inf
      %286 = vmax.xlane.f32.xlu0 %v285
      %v287 = vpop.xlane.xlu0 %286
      %v288 = vsub.f32 %v284, %v287
      %v289 = vmul.f32 %v288, 1.442695
      %v290 = vpow.pop %v289
      %v291 = vsel %vm236, %v290, 0.0
      %292 = vadd.xlane.f32.xlu0 %v291
      %v293 = vpop.xlane.xlu0 %292
      %v294 = vrcp.pop %v293
      %v295 = vmul.f32 %v290, %v294
      %v296 = vpack.c.bf16 %v295, %v295
      %297 = vrot.lane.b32.xlu0 %v232, 64
      %v298 = vpop.permute.xlu0 %297
      %v300 = vsel %vm236, %v296, 0
      %vm302 = vcmask 1043456
      %v304 = vsel %vm302, %v298, 0
      %306 = vmatprep.subr.bf16.mxu0 0
      %307 = vmatpush1.bf16.msra.mxu0 0
      %308 = vmatprep.subr.bf16.mxu0 0
      %309 = vmatpush1.bf16.msra.mxu0 0
      %310 = vmatprep.subr.bf16.mxu0 0
      %311 = vmatpush1.bf16.msra.mxu0 0
      %312 = vmatprep.subr.bf16.mxu0 0
      %313 = vmatpush1.bf16.msra.mxu0 0
      %314 = vmatprep.subr.bf16.mxu0 0
      %315 = vmatpush1.bf16.msra.mxu0 0
      %316 = vmatprep.subr.bf16.mxu0 0
      %317 = vmatpush1.bf16.msra.mxu0 0
      %318 = vmatprep.subr.bf16.mxu0 0
      %319 = vmatpush1.bf16.msra.mxu0 0
      %320 = vmatprep.subr.bf16.mxu0 0
      %321 = vmatpush1.bf16.msra.mxu0 %v304
      %322 = vmatprep.subr.bf16.mxu0 0
      %323 = vmatpush2.bf16.msra.mxu0 0
      %324 = vmatprep.subr.bf16.mxu0 0
      %325 = vmatpush2.bf16.msra.mxu0 0
      %326 = vmatprep.subr.bf16.mxu0 0
      %327 = vmatpush2.bf16.msra.mxu0 0
      %328 = vmatprep.subr.bf16.mxu0 0
      %329 = vmatpush2.bf16.msra.mxu0 0
      %330 = vmatprep.subr.bf16.mxu0 0
      %331 = vmatpush2.bf16.msra.mxu0 0
      %332 = vmatprep.subr.bf16.mxu0 0
      %333 = vmatpush2.bf16.msra.mxu0 0
      %334 = vmatprep.subr.bf16.mxu0 0
      %335 = vmatpush2.bf16.msra.mxu0 0
      %336 = vmatprep.subr.bf16.mxu0 0
      %337 = vmatpush2.bf16.msra.mxu0 0
      %338 = vmatprep.mubr.bf16.mxu0 0
      %339 = vmatmul.mubr.bf16.gmra.mxu0 %v300
      %v340 = vpop.f32.mrf.mxu0
      %v341 = vadd.f32 0.0, %v340
      %v342 = vpop.f32.mrf.mxu0
      %v343 = vpop.f32.mrf.mxu0
      %v344 = vpop.f32.mrf.mxu0
      %345 = vdwg.mxu0
      %346 = vrot.lane.b32.xlu0 %v232, 120
      %v347 = vpop.permute.xlu0 %346
      %348 = vrot.lane.b32.xlu0 %v232, 88
      %v349 = vpop.permute.xlu0 %348
      %v351 = vsel %vm236, %v347, 0
      %v354 = vsel %vm236, %v349, 0
      %356 = vmatprep.subr.bf16.mxu0 0
      %357 = vmatpush1.bf16.xpose.msra.mxu0 0
      %358 = vmatprep.subr.bf16.mxu0 0
      %359 = vmatpush1.bf16.xpose.msra.mxu0 0
      %360 = vmatprep.subr.bf16.mxu0 0
      %361 = vmatpush1.bf16.xpose.msra.mxu0 0
      %362 = vmatprep.subr.bf16.mxu0 0
      %363 = vmatpush1.bf16.xpose.msra.mxu0 0
      %364 = vmatprep.subr.bf16.mxu0 0
      %365 = vmatpush1.bf16.xpose.msra.mxu0 0
      %366 = vmatprep.subr.bf16.mxu0 0
      %367 = vmatpush1.bf16.xpose.msra.mxu0 0
      %368 = vmatprep.subr.bf16.mxu0 0
      %369 = vmatpush1.bf16.xpose.msra.mxu0 0
      %370 = vmatprep.subr.bf16.mxu0 0
      %371 = vmatpush1.bf16.xpose.msra.mxu0 %v354
      %372 = vmatprep.subr.bf16.mxu0 0
      %373 = vmatpush2.bf16.xpose.msra.mxu0 0
      %374 = vmatprep.subr.bf16.mxu0 0
      %375 = vmatpush2.bf16.xpose.msra.mxu0 0
      %376 = vmatprep.subr.bf16.mxu0 0
      %377 = vmatpush2.bf16.xpose.msra.mxu0 0
      %378 = vmatprep.subr.bf16.mxu0 0
      %379 = vmatpush2.bf16.xpose.msra.mxu0 0
      %380 = vmatprep.subr.bf16.mxu0 0
      %381 = vmatpush2.bf16.xpose.msra.mxu0 0
      %382 = vmatprep.subr.bf16.mxu0 0
      %383 = vmatpush2.bf16.xpose.msra.mxu0 0
      %384 = vmatprep.subr.bf16.mxu0 0
      %385 = vmatpush2.bf16.xpose.msra.mxu0 0
      %386 = vmatprep.subr.bf16.mxu0 0
      %387 = vmatpush2.bf16.xpose.msra.mxu0 0
      %388 = vmatprep.mubr.bf16.mxu0 0
      %389 = vmatmul.mubr.bf16.gmra.mxu0 %v351
      %v390 = vpop.f32.mrf.mxu0
      %v391 = vadd.f32 0.0, %v390
      %v392 = vpop.f32.mrf.mxu0
      %v393 = vpop.f32.mrf.mxu0
      %v394 = vpop.f32.mrf.mxu0
      %395 = vdwg.mxu0
      %v396 = vmul.f32 %v391, 0.35355338
      %v397 = vadd.f32 %v396, %v231
      %v398 = vsel %vm236, %v397, -inf
      %399 = vmax.xlane.f32.xlu0 %v398
      %v400 = vpop.xlane.xlu0 %399
      %v401 = vsub.f32 %v397, %v400
      %v402 = vmul.f32 %v401, 1.442695
      %v403 = vpow.pop %v402
      %v404 = vsel %vm236, %v403, 0.0
      %405 = vadd.xlane.f32.xlu0 %v404
      %v406 = vpop.xlane.xlu0 %405
      %v407 = vrcp.pop %v406
      %v408 = vmul.f32 %v403, %v407
      %v409 = vpack.c.bf16 %v408, %v408
      %410 = vrot.lane.b32.xlu0 %v232, 56
      %v411 = vpop.permute.xlu0 %410
      %v413 = vsel %vm236, %v409, 0
      %v416 = vsel %vm302, %v411, 0
      %418 = vmatprep.subr.bf16.mxu0 0
      %419 = vmatpush1.bf16.msra.mxu0 0
      %420 = vmatprep.subr.bf16.mxu0 0
      %421 = vmatpush1.bf16.msra.mxu0 0
      %422 = vmatprep.subr.bf16.mxu0 0
      %423 = vmatpush1.bf16.msra.mxu0 0
      %424 = vmatprep.subr.bf16.mxu0 0
      %425 = vmatpush1.bf16.msra.mxu0 0
      %426 = vmatprep.subr.bf16.mxu0 0
      %427 = vmatpush1.bf16.msra.mxu0 0
      %428 = vmatprep.subr.bf16.mxu0 0
      %429 = vmatpush1.bf16.msra.mxu0 0
      %430 = vmatprep.subr.bf16.mxu0 0
      %431 = vmatpush1.bf16.msra.mxu0 0
      %432 = vmatprep.subr.bf16.mxu0 0
      %433 = vmatpush1.bf16.msra.mxu0 %v416
      %434 = vmatprep.subr.bf16.mxu0 0
      %435 = vmatpush2.bf16.msra.mxu0 0
      %436 = vmatprep.subr.bf16.mxu0 0
      %437 = vmatpush2.bf16.msra.mxu0 0
      %438 = vmatprep.subr.bf16.mxu0 0
      %439 = vmatpush2.bf16.msra.mxu0 0
      %440 = vmatprep.subr.bf16.mxu0 0
      %441 = vmatpush2.bf16.msra.mxu0 0
      %442 = vmatprep.subr.bf16.mxu0 0
      %443 = vmatpush2.bf16.msra.mxu0 0
      %444 = vmatprep.subr.bf16.mxu0 0
      %445 = vmatpush2.bf16.msra.mxu0 0
      %446 = vmatprep.subr.bf16.mxu0 0
      %447 = vmatpush2.bf16.msra.mxu0 0
      %448 = vmatprep.subr.bf16.mxu0 0
      %449 = vmatpush2.bf16.msra.mxu0 0
      %450 = vmatprep.mubr.bf16.mxu0 0
      %451 = vmatmul.mubr.bf16.gmra.mxu0 %v413
      %v452 = vpop.f32.mrf.mxu0
      %v453 = vadd.f32 0.0, %v452
      %v454 = vpop.f32.mrf.mxu0
      %v455 = vpop.f32.mrf.mxu0
      %v456 = vpop.f32.mrf.mxu0
      %457 = vdwg.mxu0
      %458 = vrot.lane.b32.xlu0 %v232, 112
      %v459 = vpop.permute.xlu0 %458
      %460 = vrot.lane.b32.xlu0 %v232, 80
      %v461 = vpop.permute.xlu0 %460
      %v463 = vsel %vm236, %v459, 0
      %v466 = vsel %vm236, %v461, 0
      %468 = vmatprep.subr.bf16.mxu0 0
      %469 = vmatpush1.bf16.xpose.msra.mxu0 0
      %470 = vmatprep.subr.bf16.mxu0 0
      %471 = vmatpush1.bf16.xpose.msra.mxu0 0
      %472 = vmatprep.subr.bf16.mxu0 0
      %473 = vmatpush1.bf16.xpose.msra.mxu0 0
      %474 = vmatprep.subr.bf16.mxu0 0
      %475 = vmatpush1.bf16.xpose.msra.mxu0 0
      %476 = vmatprep.subr.bf16.mxu0 0
      %477 = vmatpush1.bf16.xpose.msra.mxu0 0
      %478 = vmatprep.subr.bf16.mxu0 0
      %479 = vmatpush1.bf16.xpose.msra.mxu0 0
      %480 = vmatprep.subr.bf16.mxu0 0
      %481 = vmatpush1.bf16.xpose.msra.mxu0 0
      %482 = vmatprep.subr.bf16.mxu0 0
      %483 = vmatpush1.bf16.xpose.msra.mxu0 %v466
      %484 = vmatprep.subr.bf16.mxu0 0
      %485 = vmatpush2.bf16.xpose.msra.mxu0 0
      %486 = vmatprep.subr.bf16.mxu0 0
      %487 = vmatpush2.bf16.xpose.msra.mxu0 0
      %488 = vmatprep.subr.bf16.mxu0 0
      %489 = vmatpush2.bf16.xpose.msra.mxu0 0
      %490 = vmatprep.subr.bf16.mxu0 0
      %491 = vmatpush2.bf16.xpose.msra.mxu0 0
      %492 = vmatprep.subr.bf16.mxu0 0
      %493 = vmatpush2.bf16.xpose.msra.mxu0 0
      %494 = vmatprep.subr.bf16.mxu0 0
      %495 = vmatpush2.bf16.xpose.msra.mxu0 0
      %496 = vmatprep.subr.bf16.mxu0 0
      %497 = vmatpush2.bf16.xpose.msra.mxu0 0
      %498 = vmatprep.subr.bf16.mxu0 0
      %499 = vmatpush2.bf16.xpose.msra.mxu0 0
      %500 = vmatprep.mubr.bf16.mxu0 0
      %501 = vmatmul.mubr.bf16.gmra.mxu0 %v463
      %v502 = vpop.f32.mrf.mxu0
      %v503 = vadd.f32 0.0, %v502
      %v504 = vpop.f32.mrf.mxu0
      %v505 = vpop.f32.mrf.mxu0
      %v506 = vpop.f32.mrf.mxu0
      %507 = vdwg.mxu0
      %v508 = vmul.f32 %v503, 0.35355338
      %v509 = vadd.f32 %v508, %v231
      %v510 = vsel %vm236, %v509, -inf
      %511 = vmax.xlane.f32.xlu0 %v510
      %v512 = vpop.xlane.xlu0 %511
      %v513 = vsub.f32 %v509, %v512
      %v514 = vmul.f32 %v513, 1.442695
      %v515 = vpow.pop %v514
      %v516 = vsel %vm236, %v515, 0.0
      %517 = vadd.xlane.f32.xlu0 %v516
      %v518 = vpop.xlane.xlu0 %517
      %v519 = vrcp.pop %v518
      %v520 = vmul.f32 %v515, %v519
      %v521 = vpack.c.bf16 %v520, %v520
      %522 = vrot.lane.b32.xlu0 %v232, 48
      %v523 = vpop.permute.xlu0 %522
      %v525 = vsel %vm236, %v521, 0
      %v528 = vsel %vm302, %v523, 0
      %530 = vmatprep.subr.bf16.mxu0 0
      %531 = vmatpush1.bf16.msra.mxu0 0
      %532 = vmatprep.subr.bf16.mxu0 0
      %533 = vmatpush1.bf16.msra.mxu0 0
      %534 = vmatprep.subr.bf16.mxu0 0
      %535 = vmatpush1.bf16.msra.mxu0 0
      %536 = vmatprep.subr.bf16.mxu0 0
      %537 = vmatpush1.bf16.msra.mxu0 0
      %538 = vmatprep.subr.bf16.mxu0 0
      %539 = vmatpush1.bf16.msra.mxu0 0
      %540 = vmatprep.subr.bf16.mxu0 0
      %541 = vmatpush1.bf16.msra.mxu0 0
      %542 = vmatprep.subr.bf16.mxu0 0
      %543 = vmatpush1.bf16.msra.mxu0 0
      %544 = vmatprep.subr.bf16.mxu0 0
      %545 = vmatpush1.bf16.msra.mxu0 %v528
      %546 = vmatprep.subr.bf16.mxu0 0
      %547 = vmatpush2.bf16.msra.mxu0 0
      %548 = vmatprep.subr.bf16.mxu0 0
      %549 = vmatpush2.bf16.msra.mxu0 0
      %550 = vmatprep.subr.bf16.mxu0 0
      %551 = vmatpush2.bf16.msra.mxu0 0
      %552 = vmatprep.subr.bf16.mxu0 0
      %553 = vmatpush2.bf16.msra.mxu0 0
      %554 = vmatprep.subr.bf16.mxu0 0
      %555 = vmatpush2.bf16.msra.mxu0 0
      %556 = vmatprep.subr.bf16.mxu0 0
      %557 = vmatpush2.bf16.msra.mxu0 0
      %558 = vmatprep.subr.bf16.mxu0 0
      %559 = vmatpush2.bf16.msra.mxu0 0
      %560 = vmatprep.subr.bf16.mxu0 0
      %561 = vmatpush2.bf16.msra.mxu0 0
      %562 = vmatprep.mubr.bf16.mxu0 0
      %563 = vmatmul.mubr.bf16.gmra.mxu0 %v525
      %v564 = vpop.f32.mrf.mxu0
      %v565 = vadd.f32 0.0, %v564
      %v566 = vpop.f32.mrf.mxu0
      %v567 = vpop.f32.mrf.mxu0
      %v568 = vpop.f32.mrf.mxu0
      %569 = vdwg.mxu0
      %570 = vrot.lane.b32.xlu0 %v232, 104
      %v571 = vpop.permute.xlu0 %570
      %572 = vrot.lane.b32.xlu0 %v232, 72
      %v573 = vpop.permute.xlu0 %572
      %v575 = vsel %vm236, %v571, 0
      %v578 = vsel %vm236, %v573, 0
      %580 = vmatprep.subr.bf16.mxu0 0
      %581 = vmatpush1.bf16.xpose.msra.mxu0 0
      %582 = vmatprep.subr.bf16.mxu0 0
      %583 = vmatpush1.bf16.xpose.msra.mxu0 0
      %584 = vmatprep.subr.bf16.mxu0 0
      %585 = vmatpush1.bf16.xpose.msra.mxu0 0
      %586 = vmatprep.subr.bf16.mxu0 0
      %587 = vmatpush1.bf16.xpose.msra.mxu0 0
      %588 = vmatprep.subr.bf16.mxu0 0
      %589 = vmatpush1.bf16.xpose.msra.mxu0 0
      %590 = vmatprep.subr.bf16.mxu0 0
      %591 = vmatpush1.bf16.xpose.msra.mxu0 0
      %592 = vmatprep.subr.bf16.mxu0 0
      %593 = vmatpush1.bf16.xpose.msra.mxu0 0
      %594 = vmatprep.subr.bf16.mxu0 0
      %595 = vmatpush1.bf16.xpose.msra.mxu0 %v578
      %596 = vmatprep.subr.bf16.mxu0 0
      %597 = vmatpush2.bf16.xpose.msra.mxu0 0
      %598 = vmatprep.subr.bf16.mxu0 0
      %599 = vmatpush2.bf16.xpose.msra.mxu0 0
      %600 = vmatprep.subr.bf16.mxu0 0
      %601 = vmatpush2.bf16.xpose.msra.mxu0 0
      %602 = vmatprep.subr.bf16.mxu0 0
      %603 = vmatpush2.bf16.xpose.msra.mxu0 0
      %604 = vmatprep.subr.bf16.mxu0 0
      %605 = vmatpush2.bf16.xpose.msra.mxu0 0
      %606 = vmatprep.subr.bf16.mxu0 0
      %607 = vmatpush2.bf16.xpose.msra.mxu0 0
      %608 = vmatprep.subr.bf16.mxu0 0
      %609 = vmatpush2.bf16.xpose.msra.mxu0 0
      %610 = vmatprep.subr.bf16.mxu0 0
      %611 = vmatpush2.bf16.xpose.msra.mxu0 0
      %612 = vmatprep.mubr.bf16.mxu0 0
      %613 = vmatmul.mubr.bf16.gmra.mxu0 %v575
      %v614 = vpop.f32.mrf.mxu0
      %v615 = vadd.f32 0.0, %v614
      %v616 = vpop.f32.mrf.mxu0
      %v617 = vpop.f32.mrf.mxu0
      %v618 = vpop.f32.mrf.mxu0
      %619 = vdwg.mxu0
      %v620 = vmul.f32 %v615, 0.35355338
      %v621 = vadd.f32 %v620, %v231
      %v622 = vsel %vm236, %v621, -inf
      %623 = vmax.xlane.f32.xlu0 %v622
      %v624 = vpop.xlane.xlu0 %623
      %v625 = vsub.f32 %v621, %v624
      %v626 = vmul.f32 %v625, 1.442695
      %v627 = vpow.pop %v626
      %v628 = vsel %vm236, %v627, 0.0
      %629 = vadd.xlane.f32.xlu0 %v628
      %v630 = vpop.xlane.xlu0 %629
      %v631 = vrcp.pop %v630
      %v632 = vmul.f32 %v627, %v631
      %v633 = vpack.c.bf16 %v632, %v632
      %634 = vrot.lane.b32.xlu0 %v232, 40
      %v635 = vpop.permute.xlu0 %634
      %v637 = vsel %vm236, %v633, 0
      %v640 = vsel %vm302, %v635, 0
      %642 = vmatprep.subr.bf16.mxu0 0
      %643 = vmatpush1.bf16.msra.mxu0 0
      %644 = vmatprep.subr.bf16.mxu0 0
      %645 = vmatpush1.bf16.msra.mxu0 0
      %646 = vmatprep.subr.bf16.mxu0 0
      %647 = vmatpush1.bf16.msra.mxu0 0
      %648 = vmatprep.subr.bf16.mxu0 0
      %649 = vmatpush1.bf16.msra.mxu0 0
      %650 = vmatprep.subr.bf16.mxu0 0
      %651 = vmatpush1.bf16.msra.mxu0 0
      %652 = vmatprep.subr.bf16.mxu0 0
      %653 = vmatpush1.bf16.msra.mxu0 0
      %654 = vmatprep.subr.bf16.mxu0 0
      %655 = vmatpush1.bf16.msra.mxu0 0
      %656 = vmatprep.subr.bf16.mxu0 0
      %657 = vmatpush1.bf16.msra.mxu0 %v640
      %658 = vmatprep.subr.bf16.mxu0 0
      %659 = vmatpush2.bf16.msra.mxu0 0
      %660 = vmatprep.subr.bf16.mxu0 0
      %661 = vmatpush2.bf16.msra.mxu0 0
      %662 = vmatprep.subr.bf16.mxu0 0
      %663 = vmatpush2.bf16.msra.mxu0 0
      %664 = vmatprep.subr.bf16.mxu0 0
      %665 = vmatpush2.bf16.msra.mxu0 0
      %666 = vmatprep.subr.bf16.mxu0 0
      %667 = vmatpush2.bf16.msra.mxu0 0
      %668 = vmatprep.subr.bf16.mxu0 0
      %669 = vmatpush2.bf16.msra.mxu0 0
      %670 = vmatprep.subr.bf16.mxu0 0
      %671 = vmatpush2.bf16.msra.mxu0 0
      %672 = vmatprep.subr.bf16.mxu0 0
      %673 = vmatpush2.bf16.msra.mxu0 0
      %674 = vmatprep.mubr.bf16.mxu0 0
      %675 = vmatmul.mubr.bf16.gmra.mxu0 %v637
      %v676 = vpop.f32.mrf.mxu0
      %v677 = vadd.f32 0.0, %v676
      %v678 = vpop.f32.mrf.mxu0
      %v679 = vpop.f32.mrf.mxu0
      %v680 = vpop.f32.mrf.mxu0
      %681 = vdwg.mxu0
      %683 = vrot.lane.b32.xlu0 %v453, 8
      %v684 = vpop.permute.xlu0 %683
      %687 = vrot.lane.b32.xlu0 %v565, 16
      %v688 = vpop.permute.xlu0 %687
      %691 = vrot.lane.b32.xlu0 %v677, 24
      %v692 = vpop.permute.xlu0 %691
      %v694 = vsel %vm236, %v341, %v684
      %vm695 = vcmask 130048
      %v696 = vsel %vm695, %v694, %v688
      %vm697 = vcmask 195584
      %v698 = vsel %vm697, %v696, %v692
      %v699 = vpack.c.bf16 %v698, %v698
      %v700 = vld [vmem:[%s2] sm:$0xf]
      %v701 = vld [vmem:[%s2 + $0x4] sm:$0xf]
      %v702 = vld [vmem:[%s2 + $0x8] sm:$0xf]
      %v703 = vld [vmem:[%s2 + $0xc] sm:$0xf]
      %v704 = vld [vmem:[%s3] sm:$0x1]
      %v706 = vlaneseq
      %v707 = vshrl.u32 %v706, 7
      %v708 = vsub.s32 0, %v707
      %v709 = vrot.slane %v704, %v708
      %v715 = vunpack.c.l.b16 %v700
      %v716 = vunpack.c.l.b16 %v701
      %v717 = vunpack.c.l.b16 %v702
      %v718 = vunpack.c.l.b16 %v703
      %v719 = vpack.c.b16 %v716, %v715
      %v720 = vpack.c.b16 %v718, %v717
      %vm723 = vcmask 261120
      %v725 = vsel %vm723, %v699, 0
      %727 = vmatprep.subr.bf16.mxu0 0
      %728 = vmatpush1.bf16.msra.mxu0 0
      %729 = vmatprep.subr.bf16.mxu0 0
      %730 = vmatpush1.bf16.msra.mxu0 0
      %731 = vmatprep.subr.bf16.mxu0 0
      %732 = vmatpush1.bf16.msra.mxu0 0
      %733 = vmatprep.subr.bf16.mxu0 0
      %734 = vmatpush1.bf16.msra.mxu0 0
      %735 = vmatprep.subr.bf16.mxu0 0
      %736 = vmatpush1.bf16.msra.mxu0 0
      %737 = vmatprep.subr.bf16.mxu0 0
      %738 = vmatpush1.bf16.msra.mxu0 0
      %739 = vmatprep.subr.bf16.mxu0 0
      %740 = vmatpush1.bf16.msra.mxu0 %v720
      %741 = vmatprep.subr.bf16.mxu0 0
      %742 = vmatpush1.bf16.msra.mxu0 %v719
      %743 = vmatprep.subr.bf16.mxu0 0
      %744 = vmatpush2.bf16.msra.mxu0 0
      %745 = vmatprep.subr.bf16.mxu0 0
      %746 = vmatpush2.bf16.msra.mxu0 0
      %747 = vmatprep.subr.bf16.mxu0 0
      %748 = vmatpush2.bf16.msra.mxu0 0
      %749 = vmatprep.subr.bf16.mxu0 0
      %750 = vmatpush2.bf16.msra.mxu0 0
      %751 = vmatprep.subr.bf16.mxu0 0
      %752 = vmatpush2.bf16.msra.mxu0 0
      %753 = vmatprep.subr.bf16.mxu0 0
      %754 = vmatpush2.bf16.msra.mxu0 0
      %755 = vmatprep.subr.bf16.mxu0 0
      %756 = vmatpush2.bf16.msra.mxu0 0
      %757 = vmatprep.subr.bf16.mxu0 0
      %758 = vmatpush2.bf16.msra.mxu0 0
      %759 = vmatprep.mubr.bf16.mxu0 0
      %760 = vmatmul.mubr.bf16.gmra.mxu0 %v725
      %v761 = vpop.f32.mrf.mxu0
      %v762 = vadd.f32 %v709, %v761
      %v763 = vpop.f32.mrf.mxu0
      %v764 = vpop.f32.mrf.mxu0
      %v765 = vpop.f32.mrf.mxu0
      %766 = vdwg.mxu0
      %767 = vst.msk [vmem:[%s225] sm:$0xff] %vm723, %v762
      %v768 = vand.u32 2147483647, %v762
      %v769 = vsel %vm723, %v768, -inf
      %770 = vmax.xlane.f32.xlu0 %v769
      %v771 = vpop.xlane.xlu0 %770
      %v772 = vrot.slane %v771, 4
      %v773 = vmax.f32 %v771, %v772
      %v774 = vrot.slane %v773, 2
      %v775 = vmax.f32 %v773, %v774
      %v776 = vrot.slane %v775, 1
      %v777 = vmax.f32 %v775, %v776
      %vm778 = vcmask 0
      %779 = vst.msk [vmem:[%s228] sm:$0x1] %vm778, %v777
      %p780 = scmp.lt.s32.totalorder %s17, 1
      %s781 = scalar_select %p780, %s17, 1
      %s782 = smul.addr %s781, 8
      %s783 = scalar_lea.vmem %s4, %s782
      %p784 = scmp.lt.s32.totalorder %s17, 1
      %s785 = scalar_select %p784, %s17, 1
      %s786 = scalar_lea.vmem %s5, %s785
      // Predicated region
      $region37: #{block_forward.6} parent=35 // pred_check
        %p787 = pneg %p124
      $region38: #{block_forward.6} parent=35 // pred_check_branch
        %789 = sbr.rel (%p787) target = $region40
      $region39: #{block_forward.6} parent=35 // pred_region
        _
      $region40: #{block_forward.6} parent=35 // pred_fallthru
        _
      // Predicated region
      $region41: #{block_forward.6} parent=35 // pred_check
        %p790 = pneg %p150
      $region42: #{block_forward.6} parent=35 // pred_check_branch
        %792 = sbr.rel (%p790) target = $region44
      $region43: #{block_forward.6} parent=35 // pred_region
        _
      $region44: #{block_forward.6} parent=35 // pred_fallthru
        _
    $region36: #{block_forward.6} parent=5 // pred_fallthru
      _
    %p793 = scmp.le.s32.totalorder 2, %s12
    // Predicated region
    $region45: #{block_forward.6} parent=5 // pred_check
      %p794 = pneg %p793
    $region46: #{block_forward.6} parent=5 // pred_check_branch
      %796 = sbr.rel (%p794) target = $region48
    $region47: #{block_forward.6} parent=5 // pred_region
      %s797 = ssub.s32 %s12, 2
      // Predicated region
      $region49: #{block_forward.6} parent=47 // pred_check
        %p798 = pneg %p130
      $region50: #{block_forward.6} parent=47 // pred_check_branch
        %800 = sbr.rel (%p798) target = $region52
      $region51: #{block_forward.6} parent=47 // pred_region
        %p801 = scmp.lt.s32.totalorder %s18, 1
        %s802 = scalar_select %p801, %s18, 1
        %s803 = smul.addr %s802, 8
        %s804 = scalar_lea.vmem %s4, %s803
      $region52: #{block_forward.6} parent=47 // pred_fallthru
        _
      // Predicated region
      $region53: #{block_forward.6} parent=47 // pred_check
        %p805 = pneg %p156
      $region54: #{block_forward.6} parent=47 // pred_check_branch
        %807 = sbr.rel (%p805) target = $region56
      $region55: #{block_forward.6} parent=47 // pred_region
        %p808 = scmp.lt.s32.totalorder %s18, 1
        %s809 = scalar_select %p808, %s18, 1
        %s810 = scalar_lea.vmem %s5, %s809
      $region56: #{block_forward.6} parent=47 // pred_fallthru
        _
    $region48: #{block_forward.6} parent=5 // pred_fallthru
      _
  $region6: #{block_forward.6} parent=0 // loop_footer
    %s16 = sadd.s32 1, %s12
  $region7: #{block_forward.6} parent=0 // loop_footer_branch
    %11 = sbr.rel target = $region3
  $region8: #{block_forward.6} parent=0 // loop_exit
    _

// kernel: block_forward.9
$region0: #{block_forward.9}
  #allocation0 [shape = 'u32[]', space=smem, size = 0x4, offset = 0x4, fixed_abs, tag = 'smem constant byte address 0x4 - core index']
  #allocation1 [shape = 'u32[144,128]{1,0:T(1,128)}', space=vmem, size = 0x12000, scoped, tag = 'internal scratch']
  #allocation2 [shape = 'f32[1]{0:T(128)S(6)}', space=smem, size = 0x200, scoped, tag = 'scoped memory for block_forward.9']
  %s0 = inlined_call_operand.<no memory space> [shape: f32[1], index: 0, kind: input, shape index: {}]
  %s1 = inlined_call_operand.vmem [shape: f32[16,32], index: 1, kind: input, shape index: {}]
  %s2 = inlined_call_operand.vmem [shape: f32[16,32], index: 2, kind: input, shape index: {}]
  %s3 = inlined_call_operand.vmem [shape: f32[1,32], index: 3, kind: input, shape index: {}]
  %s4 = inlined_call_operand.vmem [shape: f32[1,32], index: 4, kind: input, shape index: {}]
  %s5 = inlined_call_operand.hbm [shape: f32[16,32], index: 5, kind: output, shape index: {0}]
  %s6 = inlined_call_operand.hbm [shape: f32[1,1,1], index: 6, kind: output, shape index: {1}]
  %7 = xla_tuple %s5, %s6
  %s8 = sld [smem:[#allocation0]]
  $region38: #{block_forward.9} parent=0
    _
  %s10 = ssub.s32 1, %s8
  %s11 = scalar_select 0, %s10, %s8
  %12 = sst [smem:[#allocation2]] %s0
  $region1: #{block_forward.9} parent=0
    #allocation3 [shape = 'u8[8192]{0}', space=vmem, size = 0x2000, scoped, tag = 'output window, operand 0, single buffered']
    #allocation4 [shape = 's32[1]{0}', space=sflag, size = 0x4, scoped, tag = 'scoped memory for block_forward.9']
    #allocation5 [shape = 'u8[512]{0}', space=vmem, size = 0x400, scoped, tag = 'output window, operand 1, single buffered']
    #allocation6 [shape = 's32[1]{0}', space=sflag, size = 0x4, scoped, tag = 'scoped memory for block_forward.9']
    %13 = vsyncpa [#allocation4], 0
    %14 = vsyncpa [#allocation6], 0
    // Predicated region
    $region2: #{block_forward.9} parent=1 // pred_check
      _
    $region3: #{block_forward.9} parent=1 // pred_check_branch
      %16 = sbr.rel (0) target = $region5
    $region4: #{block_forward.9} parent=1 // pred_region
      _
    $region5: #{block_forward.9} parent=1 // pred_fallthru
      _
    // Predicated region
    $region6: #{block_forward.9} parent=1 // pred_check
      _
    $region7: #{block_forward.9} parent=1 // pred_check_branch
      %18 = sbr.rel (0) target = $region9
    $region8: #{block_forward.9} parent=1 // pred_region
      _
    $region9: #{block_forward.9} parent=1 // pred_fallthru
      _
    // Predicated region
    $region10: #{block_forward.9} parent=1 // pred_check
      _
    $region11: #{block_forward.9} parent=1 // pred_check_branch
      %20 = sbr.rel (0) target = $region13
    $region12: #{block_forward.9} parent=1 // pred_region
      _
    $region13: #{block_forward.9} parent=1 // pred_fallthru
      _
    // Predicated region
    $region14: #{block_forward.9} parent=1 // pred_check
      _
    $region15: #{block_forward.9} parent=1 // pred_check_branch
      %22 = sbr.rel (0) target = $region17
    $region16: #{block_forward.9} parent=1 // pred_region
      _
    $region17: #{block_forward.9} parent=1 // pred_fallthru
      _
    // Predicated region
    $region18: #{block_forward.9} parent=1 // pred_check
      _
    $region19: #{block_forward.9} parent=1 // pred_check_branch
      %24 = sbr.rel (0) target = $region21
    $region20: #{block_forward.9} parent=1 // pred_region
      _
    $region21: #{block_forward.9} parent=1 // pred_fallthru
      _
    %v25 = vld [vmem:[%s1] sm:$0xff]
    %v26 = vld [vmem:[%s1 + $0x8] sm:$0xff]
    %s27 = sld [smem:[#allocation2]]
    %v28 = vld [vmem:[%s3] sm:$0x1]
    %v29 = vld [vmem:[%s4] sm:$0x1]
    %v30 = vstv %s27
    %v31 = vmul.f32 %v25, %v30
    %v32 = vmul.f32 %v26, %v30
    %vm33 = vcmask 261120
    %v34 = vsel %vm33, %v31, 0.0
    %35 = vadd.xlane.f32.xlu0 %v34
    %v36 = vpop.xlane.xlu0 %35
    %v37 = vsel %vm33, %v32, 0.0
    %38 = vadd.xlane.f32.xlu0 %v37
    %v39 = vpop.xlane.xlu0 %38
    %v40 = vrcp.pop 32.0
    %v41 = vmul.f32 %v36, %v40
    %v42 = vmul.f32 %v39, %v40
    %v43 = vmul.f32 %v31, %v31
    %v44 = vmul.f32 %v32, %v32
    %v45 = vsel %vm33, %v43, 0.0
    %46 = vadd.xlane.f32.xlu0 %v45
    %v47 = vpop.xlane.xlu0 %46
    %v48 = vsel %vm33, %v44, 0.0
    %49 = vadd.xlane.f32.xlu0 %v48
    %v50 = vpop.xlane.xlu0 %49
    %v51 = vmul.f32 %v47, %v40
    %v52 = vmul.f32 %v50, %v40
    %v53 = vmul.f32 %v41, %v41
    %v54 = vmul.f32 %v42, %v42
    %v55 = vsub.f32 %v51, %v53
    %v56 = vsub.f32 %v52, %v54
    %v57 = vsub.f32 %v31, %v41
    %v58 = vsub.f32 %v32, %v42
    %v59 = vadd.f32 %v55, 1e-05
    %v60 = vadd.f32 %v56, 1e-05
    %v61 = vrsqrt.pop %v59
    %v62 = vrsqrt.pop %v60
    %v63 = vmul.f32 %v57, %v61
    %v64 = vmul.f32 %v58, %v62
    %v66 = vlaneseq
    %v67 = vshrl.u32 %v66, 7
    %v68 = vsub.s32 0, %v67
    %v69 = vrot.slane %v28, %v68
    %v71 = vmul.f32 %v63, %v69
    %v72 = vmul.f32 %v64, %v69
    %v74 = vlaneseq
    %v75 = vshrl.u32 %v74, 7
    %v76 = vsub.s32 0, %v75
    %v77 = vrot.slane %v29, %v76
    %v79 = vadd.f32 %v71, %v77
    %v80 = vadd.f32 %v72, %v77
    %v81 = vld [vmem:[%s2] sm:$0xff]
    %v82 = vld [vmem:[%s2 + $0x8] sm:$0xff]
    %v83 = vadd.f32 %v81, %v79
    %v84 = vadd.f32 %v82, %v80
    %85 = vst.msk [vmem:[#allocation3] sm:$0xff] %vm33, %v83
    %86 = vst.msk [vmem:[#allocation3 + $0x8] sm:$0xff] %vm33, %v84
    %v87 = vand.u32 2147483647, %v83
    %v88 = vand.u32 2147483647, %v84
    %v89 = vsel %vm33, %v87, -inf
    %90 = vmax.xlane.f32.xlu0 %v89
    %v91 = vpop.xlane.xlu0 %90
    %v92 = vsel %vm33, %v88, -inf
    %93 = vmax.xlane.f32.xlu0 %v92
    %v94 = vpop.xlane.xlu0 %93
    %v95 = vmax.f32 %v91, %v94
    %v96 = vrot.slane %v95, 4
    %v97 = vmax.f32 %v95, %v96
    %v98 = vrot.slane %v97, 2
    %v99 = vmax.f32 %v97, %v98
    %v100 = vrot.slane %v99, 1
    %v101 = vmax.f32 %v99, %v100
    %vm102 = vcmask 0
    %103 = vst.msk [vmem:[#allocation5] sm:$0x1] %vm102, %v101
    // Predicated region
    $region22: #{block_forward.9} parent=1 // pred_check
      _
    $region23: #{block_forward.9} parent=1 // pred_check_branch
      %105 = sbr.rel (0) target = $region25
    $region24: #{block_forward.9} parent=1 // pred_region
      %s107 = ssub.s32 256, 256
      %108 = vsyncadd [#allocation4], %s107
      %s109 = sshll.u32 [#allocation3], 4
      %s110 = int_to_ptr.vmem [resolvable:$true] %s109
      %115 = dma.vmem_to_hbm [thread:$0]  %s110, 256, %s5, [#allocation4], 128, 128, 8
    $region25: #{block_forward.9} parent=1 // pred_fallthru
      _
    // Predicated region
    $region26: #{block_forward.9} parent=1 // pred_check
      _
    $region27: #{block_forward.9} parent=1 // pred_check_branch
      %117 = sbr.rel (0) target = $region29
    $region28: #{block_forward.9} parent=1 // pred_region
      %s119 = ssub.s32 16, 16
      %120 = vsyncadd [#allocation6], %s119
      %s122 = sshll.u32 [#allocation5], 4
      %s123 = int_to_ptr.vmem [resolvable:$true] %s122
      %125 = dma.vmem_to_hbm [thread:$0]  %s123, 16, %s6, [#allocation6]
    $region29: #{block_forward.9} parent=1 // pred_fallthru
      _
    // Predicated region
    $region30: #{block_forward.9} parent=1 // pred_check
      _
    $region31: #{block_forward.9} parent=1 // pred_check_branch
      %127 = sbr.rel (0) target = $region33
    $region32: #{block_forward.9} parent=1 // pred_region
      %128 = dma.done [#allocation4], 256
    $region33: #{block_forward.9} parent=1 // pred_fallthru
      _
    // Predicated region
    $region34: #{block_forward.9} parent=1 // pred_check
      _
    $region35: #{block_forward.9} parent=1 // pred_check_branch
      %130 = sbr.rel (0) target = $region37
    $region36: #{block_forward.9} parent=1 // pred_region
      %131 = dma.done [#allocation6], 16
    $region37: #{block_forward.9} parent=1 // pred_fallthru
      _
    %132 = vsyncpa [#allocation4], 1
    %133 = vsyncpa [#allocation6], 1

// kernel: block_forward.8
$region0: #{block_forward.8}
  #allocation0 [shape = 'u32[]', space=smem, size = 0x4, offset = 0x4, fixed_abs, tag = 'smem constant byte address 0x4 - core index']
  #allocation1 [shape = 'u32[144,128]{1,0:T(1,128)}', space=vmem, size = 0x12000, scoped, tag = 'internal scratch']
  #allocation2 [shape = 'f32[1]{0:T(128)S(6)}', space=smem, size = 0x200, scoped, tag = 'scoped memory for block_forward.8']
  %s0 = inlined_call_operand.<no memory space> [shape: f32[1], index: 0, kind: input, shape index: {}]
  %s1 = inlined_call_operand.vmem [shape: f32[16,32], index: 1, kind: input, shape index: {}]
  %s2 = inlined_call_operand.vmem [shape: f32[1,32], index: 2, kind: input, shape index: {}]
  %s3 = inlined_call_operand.vmem [shape: f32[1,32], index: 3, kind: input, shape index: {}]
  %s4 = inlined_call_operand.vmem [shape: bf16[32,128], index: 4, kind: input, shape index: {}]
  %s5 = inlined_call_operand.vmem [shape: f32[1,128], index: 5, kind: input, shape index: {}]
  %s6 = inlined_call_operand.vmem [shape: bf16[128,32], index: 6, kind: input, shape index: {}]
  %s7 = inlined_call_operand.vmem [shape: f32[1,32], index: 7, kind: input, shape index: {}]
  %s8 = inlined_call_operand.vmem [shape: f32[16,32], index: 8, kind: output, shape index: {0}]
  %s9 = inlined_call_operand.hbm [shape: f32[1,1,1], index: 9, kind: output, shape index: {1}]
  %10 = xla_tuple %s8, %s9
  %s11 = sld [smem:[#allocation0]]
  $region50: #{block_forward.8} parent=0
    _
  %s13 = ssub.s32 1, %s11
  %s14 = scalar_select 0, %s13, %s11
  %15 = sst [smem:[#allocation2]] %s0
  $region1: #{block_forward.8} parent=0
    #allocation3 [shape = 'u8[512]{0}', space=vmem, size = 0x400, scoped, tag = 'output window, operand 1, single buffered']
    #allocation4 [shape = 's32[1]{0}', space=sflag, size = 0x4, scoped, tag = 'scoped memory for block_forward.8']
    %16 = vsyncpa [#allocation4], 0
    // Predicated region
    $region2: #{block_forward.8} parent=1 // pred_check
      _
    $region3: #{block_forward.8} parent=1 // pred_check_branch
      %18 = sbr.rel (0) target = $region5
    $region4: #{block_forward.8} parent=1 // pred_region
      _
    $region5: #{block_forward.8} parent=1 // pred_fallthru
      _
    // Predicated region
    $region6: #{block_forward.8} parent=1 // pred_check
      _
    $region7: #{block_forward.8} parent=1 // pred_check_branch
      %20 = sbr.rel (0) target = $region9
    $region8: #{block_forward.8} parent=1 // pred_region
      _
    $region9: #{block_forward.8} parent=1 // pred_fallthru
      _
    // Predicated region
    $region10: #{block_forward.8} parent=1 // pred_check
      _
    $region11: #{block_forward.8} parent=1 // pred_check_branch
      %22 = sbr.rel (0) target = $region13
    $region12: #{block_forward.8} parent=1 // pred_region
      _
    $region13: #{block_forward.8} parent=1 // pred_fallthru
      _
    // Predicated region
    $region14: #{block_forward.8} parent=1 // pred_check
      _
    $region15: #{block_forward.8} parent=1 // pred_check_branch
      %24 = sbr.rel (0) target = $region17
    $region16: #{block_forward.8} parent=1 // pred_region
      _
    $region17: #{block_forward.8} parent=1 // pred_fallthru
      _
    // Predicated region
    $region18: #{block_forward.8} parent=1 // pred_check
      _
    $region19: #{block_forward.8} parent=1 // pred_check_branch
      %26 = sbr.rel (0) target = $region21
    $region20: #{block_forward.8} parent=1 // pred_region
      _
    $region21: #{block_forward.8} parent=1 // pred_fallthru
      _
    // Predicated region
    $region22: #{block_forward.8} parent=1 // pred_check
      _
    $region23: #{block_forward.8} parent=1 // pred_check_branch
      %28 = sbr.rel (0) target = $region25
    $region24: #{block_forward.8} parent=1 // pred_region
      _
    $region25: #{block_forward.8} parent=1 // pred_fallthru
      _
    // Predicated region
    $region26: #{block_forward.8} parent=1 // pred_check
      _
    $region27: #{block_forward.8} parent=1 // pred_check_branch
      %30 = sbr.rel (0) target = $region29
    $region28: #{block_forward.8} parent=1 // pred_region
      _
    $region29: #{block_forward.8} parent=1 // pred_fallthru
      _
    // Predicated region
    $region30: #{block_forward.8} parent=1 // pred_check
      _
    $region31: #{block_forward.8} parent=1 // pred_check_branch
      %32 = sbr.rel (0) target = $region33
    $region32: #{block_forward.8} parent=1 // pred_region
      _
    $region33: #{block_forward.8} parent=1 // pred_fallthru
      _
    %v34 = vld [vmem:[%s1] sm:$0xff]
    %v35 = vld [vmem:[%s1 + $0x8] sm:$0xff]
    %s36 = sld [smem:[#allocation2]]
    %v37 = vld [vmem:[%s2] sm:$0x1]
    %v38 = vld [vmem:[%s3] sm:$0x1]
    %v39 = vstv %s36
    %v40 = vmul.f32 %v34, %v39
    %v41 = vmul.f32 %v35, %v39
    %vm42 = vcmask 261120
    %v43 = vsel %vm42, %v40, 0.0
    %44 = vadd.xlane.f32.xlu0 %v43
    %v45 = vpop.xlane.xlu0 %44
    %v46 = vsel %vm42, %v41, 0.0
    %47 = vadd.xlane.f32.xlu0 %v46
    %v48 = vpop.xlane.xlu0 %47
    %v49 = vrcp.pop 32.0
    %v50 = vmul.f32 %v45, %v49
    %v51 = vmul.f32 %v48, %v49
    %v52 = vmul.f32 %v40, %v40
    %v53 = vmul.f32 %v41, %v41
    %v54 = vsel %vm42, %v52, 0.0
    %55 = vadd.xlane.f32.xlu0 %v54
    %v56 = vpop.xlane.xlu0 %55
    %v57 = vsel %vm42, %v53, 0.0
    %58 = vadd.xlane.f32.xlu0 %v57
    %v59 = vpop.xlane.xlu0 %58
    %v60 = vmul.f32 %v56, %v49
    %v61 = vmul.f32 %v59, %v49
    %v62 = vmul.f32 %v50, %v50
    %v63 = vmul.f32 %v51, %v51
    %v64 = vsub.f32 %v60, %v62
    %v65 = vsub.f32 %v61, %v63
    %v66 = vsub.f32 %v40, %v50
    %v67 = vsub.f32 %v41, %v51
    %v68 = vadd.f32 %v64, 1e-05
    %v69 = vadd.f32 %v65, 1e-05
    %v70 = vrsqrt.pop %v68
    %v71 = vrsqrt.pop %v69
    %v72 = vmul.f32 %v66, %v70
    %v73 = vmul.f32 %v67, %v71
    %v75 = vlaneseq
    %v76 = vshrl.u32 %v75, 7
    %v77 = vsub.s32 0, %v76
    %v78 = vrot.slane %v37, %v77
    %v80 = vmul.f32 %v72, %v78
    %v81 = vmul.f32 %v73, %v78
    %v83 = vlaneseq
    %v84 = vshrl.u32 %v83, 7
    %v85 = vsub.s32 0, %v84
    %v86 = vrot.slane %v38, %v85
    %v88 = vadd.f32 %v80, %v86
    %v89 = vadd.f32 %v81, %v86
    %v90 = vpack.c.bf16 %v89, %v88
    %v91 = vld [vmem:[%s4] sm:$0xf]
    %v92 = vld [vmem:[%s4 + $0x4] sm:$0xf]
    %v93 = vld [vmem:[%s4 + $0x8] sm:$0xf]
    %v94 = vld [vmem:[%s4 + $0xc] sm:$0xf]
    %v95 = vld [vmem:[%s5] sm:$0x1]
    %v97 = vlaneseq
    %v98 = vshrl.u32 %v97, 7
    %v99 = vsub.s32 0, %v98
    %v100 = vrot.slane %v95, %v99
    %v106 = vunpack.c.l.b16 %v91
    %v107 = vunpack.c.l.b16 %v92
    %v108 = vunpack.c.l.b16 %v93
    %v109 = vunpack.c.l.b16 %v94
    %v110 = vpack.c.b16 %v107, %v106
    %v111 = vpack.c.b16 %v109, %v108
    %v115 = vsel %vm42, %v90, 0
    %117 = vmatprep.subr.bf16.mxu0 0
    %118 = vmatpush1.bf16.msra.mxu0 0
    %119 = vmatprep.subr.bf16.mxu0 0
    %120 = vmatpush1.bf16.msra.mxu0 0
    %121 = vmatprep.subr.bf16.mxu0 0
    %122 = vmatpush1.bf16.msra.mxu0 0
    %123 = vmatprep.subr.bf16.mxu0 0
    %124 = vmatpush1.bf16.msra.mxu0 0
    %125 = vmatprep.subr.bf16.mxu0 0
    %126 = vmatpush1.bf16.msra.mxu0 0
    %127 = vmatprep.subr.bf16.mxu0 0
    %128 = vmatpush1.bf16.msra.mxu0 0
    %129 = vmatprep.subr.bf16.mxu0 0
    %130 = vmatpush1.bf16.msra.mxu0 %v111
    %131 = vmatprep.subr.bf16.mxu0 0
    %132 = vmatpush1.bf16.msra.mxu0 %v110
    %133 = vmatprep.subr.bf16.mxu0 0
    %134 = vmatpush2.bf16.msra.mxu0 0
    %135 = vmatprep.subr.bf16.mxu0 0
    %136 = vmatpush2.bf16.msra.mxu0 0
    %137 = vmatprep.subr.bf16.mxu0 0
    %138 = vmatpush2.bf16.msra.mxu0 0
    %139 = vmatprep.subr.bf16.mxu0 0
    %140 = vmatpush2.bf16.msra.mxu0 0
    %141 = vmatprep.subr.bf16.mxu0 0
    %142 = vmatpush2.bf16.msra.mxu0 0
    %143 = vmatprep.subr.bf16.mxu0 0
    %144 = vmatpush2.bf16.msra.mxu0 0
    %145 = vmatprep.subr.bf16.mxu0 0
    %146 = vmatpush2.bf16.msra.mxu0 0
    %147 = vmatprep.subr.bf16.mxu0 0
    %148 = vmatpush2.bf16.msra.mxu0 0
    %149 = vmatprep.mubr.bf16.mxu0 0
    %150 = vmatmul.mubr.bf16.gmra.mxu0 %v115
    %v151 = vpop.f32.mrf.mxu0
    %v152 = vadd.f32 %v100, %v151
    %v153 = vpop.f32.mrf.mxu0
    %v154 = vpop.f32.mrf.mxu0
    %v155 = vadd.f32 %v100, %v154
    %v156 = vpop.f32.mrf.mxu0
    %157 = vdwg.mxu0
    %v158 = vmul.f32 %v152, 0.5
    %v159 = vmul.f32 %v155, 0.5
    %v160 = vmul.f32 %v152, 0.70710677
    %v161 = vmul.f32 %v155, 0.70710677
    %vm162 = vcmp.ge.f32.partialorder %v160, 0.0
    %vm163 = vcmp.ge.f32.partialorder %v161, 0.0
    %v164 = vsel %vm162, 1.0, -1.0
    %v165 = vsel %vm163, 1.0, -1.0
    %v166 = vand.u32 2147483647, %v160
    %v167 = vand.u32 2147483647, %v161
    %v168 = vmul.f32 %v166, 0.3275911
    %v169 = vmul.f32 %v167, 0.3275911
    %v170 = vadd.f32 %v168, 1.0
    %v171 = vadd.f32 %v169, 1.0
    %v172 = vrcp.pop %v170
    %v173 = vmul.f32 1.0, %v172
    %v174 = vrcp.pop %v171
    %v175 = vmul.f32 1.0, %v174
    %v176 = vmul.f32 %v173, 1.0614054
    %v177 = vmul.f32 %v175, 1.0614054
    %v178 = vadd.f32 %v176, -1.4531521
    %v179 = vadd.f32 %v177, -1.4531521
    %v180 = vmul.f32 %v178, %v173
    %v181 = vmul.f32 %v179, %v175
    %v182 = vadd.f32 %v180, 1.4214138
    %v183 = vadd.f32 %v181, 1.4214138
    %v184 = vmul.f32 %v182, %v173
    %v185 = vmul.f32 %v183, %v175
    %v186 = vadd.f32 %v184, -0.28449672
    %v187 = vadd.f32 %v185, -0.28449672
    %v188 = vmul.f32 %v186, %v173
    %v189 = vmul.f32 %v187, %v175
    %v190 = vadd.f32 %v188, 0.2548296
    %v191 = vadd.f32 %v189, 0.2548296
    %v192 = vmul.f32 %v190, %v173
    %v193 = vmul.f32 %v191, %v175
    %v194 = vsub.f32 0.0, %v166
    %v195 = vsub.f32 0.0, %v167
    %v196 = vmul.f32 %v194, %v166
    %v197 = vmul.f32 %v195, %v167
    %v198 = vmul.f32 %v196, 1.442695
    %v199 = vpow.pop %v198
    %v200 = vmul.f32 %v197, 1.442695
    %v201 = vpow.pop %v200
    %v202 = vmul.f32 %v192, %v199
    %v203 = vmul.f32 %v193, %v201
    %v204 = vsub.f32 1.0, %v202
    %v205 = vsub.f32 1.0, %v203
    %v206 = vmul.f32 %v164, %v204
    %v207 = vmul.f32 %v165, %v205
    %v208 = vadd.f32 %v206, 1.0
    %v209 = vadd.f32 %v207, 1.0
    %v210 = vmul.f32 %v158, %v208
    %v211 = vmul.f32 %v159, %v209
    %v212 = vpack.c.bf16 %v211, %v210
    %v213 = vld [vmem:[%s6] sm:$0xf]
    %v214 = vld [vmem:[%s6 + $0x4] sm:$0xf]
    %v215 = vld [vmem:[%s6 + $0x8] sm:$0xf]
    %v216 = vld [vmem:[%s6 + $0xc] sm:$0xf]
    %v217 = vld [vmem:[%s6 + $0x10] sm:$0xf]
    %v218 = vld [vmem:[%s6 + $0x14] sm:$0xf]
    %v219 = vld [vmem:[%s6 + $0x18] sm:$0xf]
    %v220 = vld [vmem:[%s6 + $0x1c] sm:$0xf]
    %v221 = vld [vmem:[%s6 + $0x20] sm:$0xf]
    %v222 = vld [vmem:[%s6 + $0x24] sm:$0xf]
    %v223 = vld [vmem:[%s6 + $0x28] sm:$0xf]
    %v224 = vld [vmem:[%s6 + $0x2c] sm:$0xf]
    %v225 = vld [vmem:[%s6 + $0x30] sm:$0xf]
    %v226 = vld [vmem:[%s6 + $0x34] sm:$0xf]
    %v227 = vld [vmem:[%s6 + $0x38] sm:$0xf]
    %v228 = vld [vmem:[%s6 + $0x3c] sm:$0xf]
    %v229 = vld [vmem:[%s7] sm:$0x1]
    %v231 = vlaneseq
    %v232 = vshrl.u32 %v231, 7
    %v233 = vsub.s32 0, %v232
    %v234 = vrot.slane %v229, %v233
    %v252 = vunpack.c.l.b16 %v213
    %v253 = vunpack.c.l.b16 %v214
    %v254 = vunpack.c.l.b16 %v215
    %v255 = vunpack.c.l.b16 %v216
    %v256 = vunpack.c.l.b16 %v217
    %v257 = vunpack.c.l.b16 %v218
    %v258 = vunpack.c.l.b16 %v219
    %v259 = vunpack.c.l.b16 %v220
    %v260 = vunpack.c.l.b16 %v221
    %v261 = vunpack.c.l.b16 %v222
    %v262 = vunpack.c.l.b16 %v223
    %v263 = vunpack.c.l.b16 %v224
    %v264 = vunpack.c.l.b16 %v225
    %v265 = vunpack.c.l.b16 %v226
    %v266 = vunpack.c.l.b16 %v227
    %v267 = vunpack.c.l.b16 %v228
    %v268 = vpack.c.b16 %v253, %v252
    %v269 = vpack.c.b16 %v255, %v254
    %v270 = vpack.c.b16 %v257, %v256
    %v271 = vpack.c.b16 %v259, %v258
    %v272 = vpack.c.b16 %v261, %v260
    %v273 = vpack.c.b16 %v263, %v262
    %v274 = vpack.c.b16 %v265, %v264
    %v275 = vpack.c.b16 %v267, %v266
    %284 = vmatprep.subr.bf16.mxu0 0
    %285 = vmatpush1.bf16.msra.mxu0 %v275
    %286 = vmatprep.subr.bf16.mxu0 0
    %287 = vmatpush1.bf16.msra.mxu0 %v274
    %288 = vmatprep.subr.bf16.mxu0 0
    %289 = vmatpush1.bf16.msra.mxu0 %v273
    %290 = vmatprep.subr.bf16.mxu0 0
    %291 = vmatpush1.bf16.msra.mxu0 %v272
    %292 = vmatprep.subr.bf16.mxu0 0
    %293 = vmatpush1.bf16.msra.mxu0 %v271
    %294 = vmatprep.subr.bf16.mxu0 0
    %295 = vmatpush1.bf16.msra.mxu0 %v270
    %296 = vmatprep.subr.bf16.mxu0 0
    %297 = vmatpush1.bf16.msra.mxu0 %v269
    %298 = vmatprep.subr.bf16.mxu0 0
    %299 = vmatpush1.bf16.msra.mxu0 %v268
    %300 = vmatprep.subr.bf16.mxu0 0
    %301 = vmatpush2.bf16.msra.mxu0 0
    %302 = vmatprep.subr.bf16.mxu0 0
    %303 = vmatpush2.bf16.msra.mxu0 0
    %304 = vmatprep.subr.bf16.mxu0 0
    %305 = vmatpush2.bf16.msra.mxu0 0
    %306 = vmatprep.subr.bf16.mxu0 0
    %307 = vmatpush2.bf16.msra.mxu0 0
    %308 = vmatprep.subr.bf16.mxu0 0
    %309 = vmatpush2.bf16.msra.mxu0 0
    %310 = vmatprep.subr.bf16.mxu0 0
    %311 = vmatpush2.bf16.msra.mxu0 0
    %312 = vmatprep.subr.bf16.mxu0 0
    %313 = vmatpush2.bf16.msra.mxu0 0
    %314 = vmatprep.subr.bf16.mxu0 0
    %315 = vmatpush2.bf16.msra.mxu0 0
    %316 = vmatprep.mubr.bf16.mxu0 0
    %317 = vmatmul.mubr.bf16.gmra.mxu0 %v212
    %v318 = vpop.f32.mrf.mxu0
    %v319 = vadd.f32 %v234, %v318
    %v320 = vpop.f32.mrf.mxu0
    %v321 = vpop.f32.mrf.mxu0
    %v322 = vadd.f32 %v234, %v321
    %v323 = vpop.f32.mrf.mxu0
    %324 = vdwg.mxu0
    %325 = vst.msk [vmem:[%s8] sm:$0xff] %vm42, %v319
    %326 = vst.msk [vmem:[%s8 + $0x8] sm:$0xff] %vm42, %v322
    %v327 = vand.u32 2147483647, %v319
    %v328 = vand.u32 2147483647, %v322
    %v329 = vsel %vm42, %v327, -inf
    %330 = vmax.xlane.f32.xlu0 %v329
    %v331 = vpop.xlane.xlu0 %330
    %v332 = vsel %vm42, %v328, -inf
    %333 = vmax.xlane.f32.xlu0 %v332
    %v334 = vpop.xlane.xlu0 %333
    %v335 = vmax.f32 %v331, %v334
    %v336 = vrot.slane %v335, 4
    %v337 = vmax.f32 %v335, %v336
    %v338 = vrot.slane %v337, 2
    %v339 = vmax.f32 %v337, %v338
    %v340 = vrot.slane %v339, 1
    %v341 = vmax.f32 %v339, %v340
    %vm342 = vcmask 0
    %343 = vst.msk [vmem:[#allocation3] sm:$0x1] %vm342, %v341
    // Predicated region
    $region34: #{block_forward.8} parent=1 // pred_check
      _
    $region35: #{block_forward.8} parent=1 // pred_check_branch
      %345 = sbr.rel (0) target = $region37
    $region36: #{block_forward.8} parent=1 // pred_region
      _
    $region37: #{block_forward.8} parent=1 // pred_fallthru
      _
    // Predicated region
    $region38: #{block_forward.8} parent=1 // pred_check
      _
    $region39: #{block_forward.8} parent=1 // pred_check_branch
      %347 = sbr.rel (0) target = $region41
    $region40: #{block_forward.8} parent=1 // pred_region
      %s349 = ssub.s32 16, 16
      %350 = vsyncadd [#allocation4], %s349
      %s352 = sshll.u32 [#allocation3], 4
      %s353 = int_to_ptr.vmem [resolvable:$true] %s352
      %355 = dma.vmem_to_hbm [thread:$0]  %s353, 16, %s9, [#allocation4]
    $region41: #{block_forward.8} parent=1 // pred_fallthru
      _
    // Predicated region
    $region42: #{block_forward.8} parent=1 // pred_check
      _
    $region43: #{block_forward.8} parent=1 // pred_check_branch
      %357 = sbr.rel (0) target = $region45
    $region44: #{block_forward.8} parent=1 // pred_region
      _
    $region45: #{block_forward.8} parent=1 // pred_fallthru
      _
    // Predicated region
    $region46: #{block_forward.8} parent=1 // pred_check
      _
    $region47: #{block_forward.8} parent=1 // pred_check_branch
      %359 = sbr.rel (0) target = $region49
    $region48: #{block_forward.8} parent=1 // pred_region
      %360 = dma.done [#allocation4], 16
    $region49: #{block_forward.8} parent=1 // pred_fallthru
      _
    %361 = vsyncpa [#allocation4], 1

</llo_original>
